<compile_context>
chip_gen: v5e
topology: v5e:2x2
jax: 0.10.0
libtpu: 0.0.40
codegen_flags: <defaults>
</compile_context>

<pallas_src>
import jax
import jax.numpy as jnp
from jax import lax
from jax.experimental import pallas as pl
from jax.experimental.pallas import tpu as pltpu


# ---------------------------------------------------------------------------
# Fused kernel: mask + concat + 3x3 conv (SAME) + bias + (tanh+1)/2
#   per grid step: one image.
#   w_ref: SMEM (108,)  flattened (Cout=3, Cin=4, 3, 3) weights
#   b_ref: SMEM (3,)    bias
#   img_ref  : VMEM (1, 3, H, W)
#   edge_ref : VMEM (1, 1, H, W)
#   mask_ref : VMEM (1, 1, H, W)
#   out_ref  : VMEM (1, 3, H, W)
# ---------------------------------------------------------------------------
def fused_inpaint_head_kernel(w_ref, b_ref, img_ref, edge_ref, mask_ref, out_ref):
    H = img_ref.shape[2]
    W = img_ref.shape[3]
    n_ci, n_co = 4, 3

    # ---- fused masking + channel "concat" (kept as a list, never hits HBM) ----
    keep = 1.0 - mask_ref[0, 0]                               # (H, W)
    xin = [img_ref[0, c] * keep for c in range(3)]            # masked RGB
    xin.append(edge_ref[0, 0])                                # edge channel

    # ---- 0/1 shift matrices built in-kernel from 2-D iota (no HBM traffic) ----
    # Sy[oy][y, k] = 1 iff k == y + oy   -> (Sy @ a)[y, x] = a[y+oy, x] (zero-fill)
    # Sx[ox][k, j] = 1 iff k == j + ox   -> (a @ Sx)[y, j] = a[y, j+ox] (zero-fill)
    rh = lax.broadcasted_iota(jnp.int32, (H, H), 0)
    ch = lax.broadcasted_iota(jnp.int32, (H, H), 1)
    rw = lax.broadcasted_iota(jnp.int32, (W, W), 0)
    cw = lax.broadcasted_iota(jnp.int32, (W, W), 1)
    one = jnp.float32(1.0)
    zero = jnp.float32(0.0)
    sy = {oy: jnp.where(ch == rh + oy, one, zero) for oy in (-1, 1)}
    sx = {ox: jnp.where(rw == cw + ox, one, zero) for ox in (-1, 1)}

    # xs[ci][ox][y, x] = xin[ci][y, x + ox]  (W-direction taps, MXU)
    xs = []
    for ci in range(n_ci):
        xs.append({
            0: xin[ci],
            -1: jnp.dot(xin[ci], sx[-1], preferred_element_type=jnp.float32),
            1: jnp.dot(xin[ci], sx[1], preferred_element_type=jnp.float32),
        })

    def wscalar(co, ci, oy, ox):
        # row-major index into the flattened (3, 4, 3, 3) weight tensor
        return w_ref[((co * n_ci + ci) * 3 + (oy + 1)) * 3 + (ox + 1)]

    for co in range(n_co):
        acc = jnp.zeros((H, W), jnp.float32) + b_ref[co]
        for oy in (-1, 0, 1):
            inner = jnp.zeros((H, W), jnp.float32)
            for ci in range(n_ci):
                for ox in (-1, 0, 1):
                    inner = inner + wscalar(co, ci, oy, ox) * xs[ci][ox]
            if oy == 0:
                acc = acc + inner
            else:
                acc = acc + jnp.dot(sy[oy], inner,
                                    preferred_element_type=jnp.float32)
        out_ref[0, co] = (jnp.tanh(acc) + 1.0) * 0.5


def inpaint_generator_head(images, edges, masks, w, b):
    """Fused forward: out = (tanh(conv3x3(cat([img*(1-mask), edge]))) + 1)/2."""
    B, _, H, W = images.shape
    w_flat = w.astype(jnp.float32).reshape(-1)   # (3*4*3*3,) = (108,)
    b = b.astype(jnp.float32)

    # Advisory cost hint for the XLA scheduler.
    mac_flops = 2 * B * H * W * 3 * 4 * 9
    shift_flops = B * (8 * 2 * H * W * W + 6 * 2 * H * H * W)
    cost = pl.CostEstimate(
        flops=int(mac_flops + shift_flops),
        transcendentals=int(B * 3 * H * W),
        bytes_accessed=int(4 * B * H * W * (3 + 1 + 1 + 3)),
    )

    out = pl.pallas_call(
        fused_inpaint_head_kernel,
        out_shape=jax.ShapeDtypeStruct((B, 3, H, W), jnp.float32),
        grid=(B,),
        in_specs=[
            pl.BlockSpec(memory_space=pltpu.MemorySpace.SMEM),     # w_flat
            pl.BlockSpec(memory_space=pltpu.MemorySpace.SMEM),     # b
            pl.BlockSpec((1, 3, H, W), lambda i: (i, 0, 0, 0)),    # images
            pl.BlockSpec((1, 1, H, W), lambda i: (i, 0, 0, 0)),    # edges
            pl.BlockSpec((1, 1, H, W), lambda i: (i, 0, 0, 0)),    # masks
        ],
        out_specs=pl.BlockSpec((1, 3, H, W), lambda i: (i, 0, 0, 0)),
        compiler_params=pltpu.CompilerParams(
            dimension_semantics=("parallel",)),
        cost_estimate=cost,
    )(w_flat, b,
      images.astype(jnp.float32),
      edges.astype(jnp.float32),
      masks.astype(jnp.float32))
    return out


# ---------------------------------------------------------------------------
# InpaintingModel.forward
# ---------------------------------------------------------------------------
def inpainting_model_forward(params, images, edges, masks):
    # images_masked = images*(1-masks); inputs = cat([images_masked, edges], 1);
    # outputs = generator(inputs)  -- all fused into one Pallas kernel.
    return inpaint_generator_head(images, edges, masks, params["w"], params["b"])


def init_params(key):
    kw, kb = jax.random.split(key)
    w = jax.random.normal(kw, (3, 4, 3, 3), jnp.float32) * 0.1   # OIHW
    b = jax.random.normal(kb, (3,), jnp.float32) * 0.1
    return {"w": w, "b": b}


if __name__ == "__main__":
    key = jax.random.PRNGKey(0)
    k_img, k_edge, k_mask, k_param = jax.random.split(key, 4)

    B, H, W = 2, 16, 16
    images = jax.random.uniform(k_img, (B, 3, H, W), jnp.float32)           # NCHW
    edges = jax.random.uniform(k_edge, (B, 1, H, W), jnp.float32)
    masks = (jax.random.uniform(k_mask, (B, 1, H, W)) > 0.5).astype(jnp.float32)

    params = init_params(k_param)

    out = jax.jit(inpainting_model_forward)(params, images, edges, masks)
    out = jax.block_until_ready(out)
    assert out.shape == (B, 3, H, W), out.shape

    # Reference check with plain JAX (same math path, high-precision conv).
    ref_in = jnp.concatenate([images * (1.0 - masks), edges], axis=1)
    ref_conv = lax.conv_general_dilated(
        ref_in, params["w"], window_strides=(1, 1), padding="SAME",
        dimension_numbers=("NCHW", "OIHW", "NCHW"),
        precision=lax.Precision.HIGHEST)
    ref = (jnp.tanh(ref_conv + params["b"][None, :, None, None]) + 1.0) * 0.5
    max_err = float(jnp.max(jnp.abs(out - ref)))
    # Tolerance covers possible MXU pass rounding of the 0/1 shift matmuls.
    assert max_err < 5e-3, max_err

    print("KERNEL_OK")
</pallas_src>

<mosaic_0001>
module attributes {stable_mosaic.version = 11 : i64} {
  func.func @fused_inpaint_head_kernel(%arg0: i32, %arg1: memref<108xf32, #tpu.memory_space<smem>>, %arg2: memref<3xf32, #tpu.memory_space<smem>>, %arg3: memref<1x3x16x16xf32, #tpu.memory_space<vmem>>, %arg4: memref<1x1x16x16xf32, #tpu.memory_space<vmem>>, %arg5: memref<1x1x16x16xf32, #tpu.memory_space<vmem>>, %arg6: memref<1x3x16x16xf32, #tpu.memory_space<vmem>>) attributes {dimension_semantics = [#tpu.dimension_semantics<parallel>], iteration_bounds = array<i64: 2>, scalar_prefetch = 0 : i64, scratch_operands = 0 : i64, tpu.core_type = #tpu.core_type<tc>, window_params = [{transform_indices = @transform_0, window_bounds = array<i64: 108>}, {transform_indices = @transform_1, window_bounds = array<i64: 3>}, {transform_indices = @transform_2, window_bounds = array<i64: 1, 3, 16, 16>}, {transform_indices = @transform_3, window_bounds = array<i64: 1, 1, 16, 16>}, {transform_indices = @transform_4, window_bounds = array<i64: 1, 1, 16, 16>}, {transform_indices = @transform_5, window_bounds = array<i64: 1, 3, 16, 16>}]} {
    %c0 = arith.constant 0 : index
    %c0_0 = arith.constant 0 : index
    %c0_1 = arith.constant 0 : index
    %c0_2 = arith.constant 0 : index
    %0 = vector.load %arg5[%c0, %c0_0, %c0_1, %c0_2] : memref<1x1x16x16xf32, #tpu.memory_space<vmem>>, vector<1x1x16x16xf32>
    %1 = vector.shape_cast %0 : vector<1x1x16x16xf32> to vector<16x16xf32>
    %cst = arith.constant 1.000000e+00 : f32
    %2 = vector.broadcast %cst : f32 to vector<16x16xf32>
    %3 = arith.subf %2, %1 : vector<16x16xf32>
    %c0_3 = arith.constant 0 : index
    %c0_4 = arith.constant 0 : index
    %c0_5 = arith.constant 0 : index
    %c0_6 = arith.constant 0 : index
    %4 = vector.load %arg3[%c0_3, %c0_4, %c0_5, %c0_6] : memref<1x3x16x16xf32, #tpu.memory_space<vmem>>, vector<1x1x16x16xf32>
    %5 = vector.shape_cast %4 : vector<1x1x16x16xf32> to vector<16x16xf32>
    %6 = arith.mulf %5, %3 : vector<16x16xf32>
    %c0_7 = arith.constant 0 : index
    %c1 = arith.constant 1 : index
    %c0_8 = arith.constant 0 : index
    %c0_9 = arith.constant 0 : index
    %7 = vector.load %arg3[%c0_7, %c1, %c0_8, %c0_9] : memref<1x3x16x16xf32, #tpu.memory_space<vmem>>, vector<1x1x16x16xf32>
    %8 = vector.shape_cast %7 : vector<1x1x16x16xf32> to vector<16x16xf32>
    %9 = arith.mulf %8, %3 : vector<16x16xf32>
    %c0_10 = arith.constant 0 : index
    %c2 = arith.constant 2 : index
    %c0_11 = arith.constant 0 : index
    %c0_12 = arith.constant 0 : index
    %10 = vector.load %arg3[%c0_10, %c2, %c0_11, %c0_12] : memref<1x3x16x16xf32, #tpu.memory_space<vmem>>, vector<1x1x16x16xf32>
    %11 = vector.shape_cast %10 : vector<1x1x16x16xf32> to vector<16x16xf32>
    %12 = arith.mulf %11, %3 : vector<16x16xf32>
    %c0_13 = arith.constant 0 : index
    %c0_14 = arith.constant 0 : index
    %c0_15 = arith.constant 0 : index
    %c0_16 = arith.constant 0 : index
    %13 = vector.load %arg4[%c0_13, %c0_14, %c0_15, %c0_16] : memref<1x1x16x16xf32, #tpu.memory_space<vmem>>, vector<1x1x16x16xf32>
    %14 = vector.shape_cast %13 : vector<1x1x16x16xf32> to vector<16x16xf32>
    %15 = tpu.iota {dimensions = array<i32: 0>} : vector<16x16xi32>
    %16 = tpu.iota {dimensions = array<i32: 1>} : vector<16x16xi32>
    %17 = tpu.iota {dimensions = array<i32: 0>} : vector<16x16xi32>
    %18 = tpu.iota {dimensions = array<i32: 1>} : vector<16x16xi32>
    %c-1_i32 = arith.constant -1 : i32
    %19 = vector.broadcast %c-1_i32 : i32 to vector<16x16xi32>
    %20 = arith.addi %15, %19 : vector<16x16xi32>
    %21 = arith.cmpi eq, %16, %20 : vector<16x16xi32>
    %cst_17 = arith.constant 1.000000e+00 : f32
    %cst_18 = arith.constant 0.000000e+00 : f32
    %22 = vector.broadcast %cst_17 : f32 to vector<16x16xf32>
    %23 = vector.broadcast %cst_18 : f32 to vector<16x16xf32>
    %24 = arith.select %21, %22, %23 : vector<16x16xi1>, vector<16x16xf32>
    %c1_i32 = arith.constant 1 : i32
    %25 = vector.broadcast %c1_i32 : i32 to vector<16x16xi32>
    %26 = arith.addi %15, %25 : vector<16x16xi32>
    %27 = arith.cmpi eq, %16, %26 : vector<16x16xi32>
    %cst_19 = arith.constant 1.000000e+00 : f32
    %cst_20 = arith.constant 0.000000e+00 : f32
    %28 = vector.broadcast %cst_19 : f32 to vector<16x16xf32>
    %29 = vector.broadcast %cst_20 : f32 to vector<16x16xf32>
    %30 = arith.select %27, %28, %29 : vector<16x16xi1>, vector<16x16xf32>
    %c-1_i32_21 = arith.constant -1 : i32
    %31 = vector.broadcast %c-1_i32_21 : i32 to vector<16x16xi32>
    %32 = arith.addi %18, %31 : vector<16x16xi32>
    %33 = arith.cmpi eq, %17, %32 : vector<16x16xi32>
    %cst_22 = arith.constant 1.000000e+00 : f32
    %cst_23 = arith.constant 0.000000e+00 : f32
    %34 = vector.broadcast %cst_22 : f32 to vector<16x16xf32>
    %35 = vector.broadcast %cst_23 : f32 to vector<16x16xf32>
    %36 = arith.select %33, %34, %35 : vector<16x16xi1>, vector<16x16xf32>
    %c1_i32_24 = arith.constant 1 : i32
    %37 = vector.broadcast %c1_i32_24 : i32 to vector<16x16xi32>
    %38 = arith.addi %18, %37 : vector<16x16xi32>
    %39 = arith.cmpi eq, %17, %38 : vector<16x16xi32>
    %cst_25 = arith.constant 1.000000e+00 : f32
    %cst_26 = arith.constant 0.000000e+00 : f32
    %40 = vector.broadcast %cst_25 : f32 to vector<16x16xf32>
    %41 = vector.broadcast %cst_26 : f32 to vector<16x16xf32>
    %42 = arith.select %39, %40, %41 : vector<16x16xi1>, vector<16x16xf32>
    %cst_27 = arith.constant dense<0.000000e+00> : vector<16x16xf32>
    %43 = tpu.matmul %6, %36, %cst_27 {dimension_numbers = #tpu.dot_dimension_numbers<[1], [0], [0], [1], [0, 0, 1, 1], [], []>} : vector<16x16xf32>, vector<16x16xf32>, vector<16x16xf32> -> vector<16x16xf32>
    %cst_28 = arith.constant dense<0.000000e+00> : vector<16x16xf32>
    %44 = tpu.matmul %6, %42, %cst_28 {dimension_numbers = #tpu.dot_dimension_numbers<[1], [0], [0], [1], [0, 0, 1, 1], [], []>} : vector<16x16xf32>, vector<16x16xf32>, vector<16x16xf32> -> vector<16x16xf32>
    %cst_29 = arith.constant dense<0.000000e+00> : vector<16x16xf32>
    %45 = tpu.matmul %9, %36, %cst_29 {dimension_numbers = #tpu.dot_dimension_numbers<[1], [0], [0], [1], [0, 0, 1, 1], [], []>} : vector<16x16xf32>, vector<16x16xf32>, vector<16x16xf32> -> vector<16x16xf32>
    %cst_30 = arith.constant dense<0.000000e+00> : vector<16x16xf32>
    %46 = tpu.matmul %9, %42, %cst_30 {dimension_numbers = #tpu.dot_dimension_numbers<[1], [0], [0], [1], [0, 0, 1, 1], [], []>} : vector<16x16xf32>, vector<16x16xf32>, vector<16x16xf32> -> vector<16x16xf32>
    %cst_31 = arith.constant dense<0.000000e+00> : vector<16x16xf32>
    %47 = tpu.matmul %12, %36, %cst_31 {dimension_numbers = #tpu.dot_dimension_numbers<[1], [0], [0], [1], [0, 0, 1, 1], [], []>} : vector<16x16xf32>, vector<16x16xf32>, vector<16x16xf32> -> vector<16x16xf32>
    %cst_32 = arith.constant dense<0.000000e+00> : vector<16x16xf32>
    %48 = tpu.matmul %12, %42, %cst_32 {dimension_numbers = #tpu.dot_dimension_numbers<[1], [0], [0], [1], [0, 0, 1, 1], [], []>} : vector<16x16xf32>, vector<16x16xf32>, vector<16x16xf32> -> vector<16x16xf32>
    %cst_33 = arith.constant dense<0.000000e+00> : vector<16x16xf32>
    %49 = tpu.matmul %14, %36, %cst_33 {dimension_numbers = #tpu.dot_dimension_numbers<[1], [0], [0], [1], [0, 0, 1, 1], [], []>} : vector<16x16xf32>, vector<16x16xf32>, vector<16x16xf32> -> vector<16x16xf32>
    %cst_34 = arith.constant dense<0.000000e+00> : vector<16x16xf32>
    %50 = tpu.matmul %14, %42, %cst_34 {dimension_numbers = #tpu.dot_dimension_numbers<[1], [0], [0], [1], [0, 0, 1, 1], [], []>} : vector<16x16xf32>, vector<16x16xf32>, vector<16x16xf32> -> vector<16x16xf32>
    %cst_35 = arith.constant 0.000000e+00 : f32
    %51 = vector.broadcast %cst_35 : f32 to vector<16x16xf32>
    %c0_36 = arith.constant 0 : index
    %52 = memref.load %arg2[%c0_36] : memref<3xf32, #tpu.memory_space<smem>>
    %53 = vector.broadcast %52 : f32 to vector<16x16xf32>
    %54 = arith.addf %51, %53 : vector<16x16xf32>
    %cst_37 = arith.constant 0.000000e+00 : f32
    %55 = vector.broadcast %cst_37 : f32 to vector<16x16xf32>
    %c0_38 = arith.constant 0 : index
    %56 = memref.load %arg1[%c0_38] : memref<108xf32, #tpu.memory_space<smem>>
    %57 = vector.broadcast %56 : f32 to vector<16x16xf32>
    %58 = arith.mulf %57, %43 : vector<16x16xf32>
    %59 = arith.addf %55, %58 : vector<16x16xf32>
    %c1_39 = arith.constant 1 : index
    %60 = memref.load %arg1[%c1_39] : memref<108xf32, #tpu.memory_space<smem>>
    %61 = vector.broadcast %60 : f32 to vector<16x16xf32>
    %62 = arith.mulf %61, %6 : vector<16x16xf32>
    %63 = arith.addf %59, %62 : vector<16x16xf32>
    %c2_40 = arith.constant 2 : index
    %64 = memref.load %arg1[%c2_40] : memref<108xf32, #tpu.memory_space<smem>>
    %65 = vector.broadcast %64 : f32 to vector<16x16xf32>
    %66 = arith.mulf %65, %44 : vector<16x16xf32>
    %67 = arith.addf %63, %66 : vector<16x16xf32>
    %c9 = arith.constant 9 : index
    %68 = memref.load %arg1[%c9] : memref<108xf32, #tpu.memory_space<smem>>
    %69 = vector.broadcast %68 : f32 to vector<16x16xf32>
    %70 = arith.mulf %69, %45 : vector<16x16xf32>
    %71 = arith.addf %67, %70 : vector<16x16xf32>
    %c10 = arith.constant 10 : index
    %72 = memref.load %arg1[%c10] : memref<108xf32, #tpu.memory_space<smem>>
    %73 = vector.broadcast %72 : f32 to vector<16x16xf32>
    %74 = arith.mulf %73, %9 : vector<16x16xf32>
    %75 = arith.addf %71, %74 : vector<16x16xf32>
    %c11 = arith.constant 11 : index
    %76 = memref.load %arg1[%c11] : memref<108xf32, #tpu.memory_space<smem>>
    %77 = vector.broadcast %76 : f32 to vector<16x16xf32>
    %78 = arith.mulf %77, %46 : vector<16x16xf32>
    %79 = arith.addf %75, %78 : vector<16x16xf32>
    %c18 = arith.constant 18 : index
    %80 = memref.load %arg1[%c18] : memref<108xf32, #tpu.memory_space<smem>>
    %81 = vector.broadcast %80 : f32 to vector<16x16xf32>
    %82 = arith.mulf %81, %47 : vector<16x16xf32>
    %83 = arith.addf %79, %82 : vector<16x16xf32>
    %c19 = arith.constant 19 : index
    %84 = memref.load %arg1[%c19] : memref<108xf32, #tpu.memory_space<smem>>
    %85 = vector.broadcast %84 : f32 to vector<16x16xf32>
    %86 = arith.mulf %85, %12 : vector<16x16xf32>
    %87 = arith.addf %83, %86 : vector<16x16xf32>
    %c20 = arith.constant 20 : index
    %88 = memref.load %arg1[%c20] : memref<108xf32, #tpu.memory_space<smem>>
    %89 = vector.broadcast %88 : f32 to vector<16x16xf32>
    %90 = arith.mulf %89, %48 : vector<16x16xf32>
    %91 = arith.addf %87, %90 : vector<16x16xf32>
    %c27 = arith.constant 27 : index
    %92 = memref.load %arg1[%c27] : memref<108xf32, #tpu.memory_space<smem>>
    %93 = vector.broadcast %92 : f32 to vector<16x16xf32>
    %94 = arith.mulf %93, %49 : vector<16x16xf32>
    %95 = arith.addf %91, %94 : vector<16x16xf32>
    %c28 = arith.constant 28 : index
    %96 = memref.load %arg1[%c28] : memref<108xf32, #tpu.memory_space<smem>>
    %97 = vector.broadcast %96 : f32 to vector<16x16xf32>
    %98 = arith.mulf %97, %14 : vector<16x16xf32>
    %99 = arith.addf %95, %98 : vector<16x16xf32>
    %c29 = arith.constant 29 : index
    %100 = memref.load %arg1[%c29] : memref<108xf32, #tpu.memory_space<smem>>
    %101 = vector.broadcast %100 : f32 to vector<16x16xf32>
    %102 = arith.mulf %101, %50 : vector<16x16xf32>
    %103 = arith.addf %99, %102 : vector<16x16xf32>
    %cst_41 = arith.constant dense<0.000000e+00> : vector<16x16xf32>
    %104 = tpu.matmul %24, %103, %cst_41 {dimension_numbers = #tpu.dot_dimension_numbers<[1], [0], [0], [1], [0, 0, 1, 1], [], []>} : vector<16x16xf32>, vector<16x16xf32>, vector<16x16xf32> -> vector<16x16xf32>
    %105 = arith.addf %54, %104 : vector<16x16xf32>
    %cst_42 = arith.constant 0.000000e+00 : f32
    %106 = vector.broadcast %cst_42 : f32 to vector<16x16xf32>
    %c3 = arith.constant 3 : index
    %107 = memref.load %arg1[%c3] : memref<108xf32, #tpu.memory_space<smem>>
    %108 = vector.broadcast %107 : f32 to vector<16x16xf32>
    %109 = arith.mulf %108, %43 : vector<16x16xf32>
    %110 = arith.addf %106, %109 : vector<16x16xf32>
    %c4 = arith.constant 4 : index
    %111 = memref.load %arg1[%c4] : memref<108xf32, #tpu.memory_space<smem>>
    %112 = vector.broadcast %111 : f32 to vector<16x16xf32>
    %113 = arith.mulf %112, %6 : vector<16x16xf32>
    %114 = arith.addf %110, %113 : vector<16x16xf32>
    %c5 = arith.constant 5 : index
    %115 = memref.load %arg1[%c5] : memref<108xf32, #tpu.memory_space<smem>>
    %116 = vector.broadcast %115 : f32 to vector<16x16xf32>
    %117 = arith.mulf %116, %44 : vector<16x16xf32>
    %118 = arith.addf %114, %117 : vector<16x16xf32>
    %c12 = arith.constant 12 : index
    %119 = memref.load %arg1[%c12] : memref<108xf32, #tpu.memory_space<smem>>
    %120 = vector.broadcast %119 : f32 to vector<16x16xf32>
    %121 = arith.mulf %120, %45 : vector<16x16xf32>
    %122 = arith.addf %118, %121 : vector<16x16xf32>
    %c13 = arith.constant 13 : index
    %123 = memref.load %arg1[%c13] : memref<108xf32, #tpu.memory_space<smem>>
    %124 = vector.broadcast %123 : f32 to vector<16x16xf32>
    %125 = arith.mulf %124, %9 : vector<16x16xf32>
    %126 = arith.addf %122, %125 : vector<16x16xf32>
    %c14 = arith.constant 14 : index
    %127 = memref.load %arg1[%c14] : memref<108xf32, #tpu.memory_space<smem>>
    %128 = vector.broadcast %127 : f32 to vector<16x16xf32>
    %129 = arith.mulf %128, %46 : vector<16x16xf32>
    %130 = arith.addf %126, %129 : vector<16x16xf32>
    %c21 = arith.constant 21 : index
    %131 = memref.load %arg1[%c21] : memref<108xf32, #tpu.memory_space<smem>>
    %132 = vector.broadcast %131 : f32 to vector<16x16xf32>
    %133 = arith.mulf %132, %47 : vector<16x16xf32>
    %134 = arith.addf %130, %133 : vector<16x16xf32>
    %c22 = arith.constant 22 : index
    %135 = memref.load %arg1[%c22] : memref<108xf32, #tpu.memory_space<smem>>
    %136 = vector.broadcast %135 : f32 to vector<16x16xf32>
    %137 = arith.mulf %136, %12 : vector<16x16xf32>
    %138 = arith.addf %134, %137 : vector<16x16xf32>
    %c23 = arith.constant 23 : index
    %139 = memref.load %arg1[%c23] : memref<108xf32, #tpu.memory_space<smem>>
    %140 = vector.broadcast %139 : f32 to vector<16x16xf32>
    %141 = arith.mulf %140, %48 : vector<16x16xf32>
    %142 = arith.addf %138, %141 : vector<16x16xf32>
    %c30 = arith.constant 30 : index
    %143 = memref.load %arg1[%c30] : memref<108xf32, #tpu.memory_space<smem>>
    %144 = vector.broadcast %143 : f32 to vector<16x16xf32>
    %145 = arith.mulf %144, %49 : vector<16x16xf32>
    %146 = arith.addf %142, %145 : vector<16x16xf32>
    %c31 = arith.constant 31 : index
    %147 = memref.load %arg1[%c31] : memref<108xf32, #tpu.memory_space<smem>>
    %148 = vector.broadcast %147 : f32 to vector<16x16xf32>
    %149 = arith.mulf %148, %14 : vector<16x16xf32>
    %150 = arith.addf %146, %149 : vector<16x16xf32>
    %c32 = arith.constant 32 : index
    %151 = memref.load %arg1[%c32] : memref<108xf32, #tpu.memory_space<smem>>
    %152 = vector.broadcast %151 : f32 to vector<16x16xf32>
    %153 = arith.mulf %152, %50 : vector<16x16xf32>
    %154 = arith.addf %150, %153 : vector<16x16xf32>
    %155 = arith.addf %105, %154 : vector<16x16xf32>
    %cst_43 = arith.constant 0.000000e+00 : f32
    %156 = vector.broadcast %cst_43 : f32 to vector<16x16xf32>
    %c6 = arith.constant 6 : index
    %157 = memref.load %arg1[%c6] : memref<108xf32, #tpu.memory_space<smem>>
    %158 = vector.broadcast %157 : f32 to vector<16x16xf32>
    %159 = arith.mulf %158, %43 : vector<16x16xf32>
    %160 = arith.addf %156, %159 : vector<16x16xf32>
    %c7 = arith.constant 7 : index
    %161 = memref.load %arg1[%c7] : memref<108xf32, #tpu.memory_space<smem>>
    %162 = vector.broadcast %161 : f32 to vector<16x16xf32>
    %163 = arith.mulf %162, %6 : vector<16x16xf32>
    %164 = arith.addf %160, %163 : vector<16x16xf32>
    %c8 = arith.constant 8 : index
    %165 = memref.load %arg1[%c8] : memref<108xf32, #tpu.memory_space<smem>>
    %166 = vector.broadcast %165 : f32 to vector<16x16xf32>
    %167 = arith.mulf %166, %44 : vector<16x16xf32>
    %168 = arith.addf %164, %167 : vector<16x16xf32>
    %c15 = arith.constant 15 : index
    %169 = memref.load %arg1[%c15] : memref<108xf32, #tpu.memory_space<smem>>
    %170 = vector.broadcast %169 : f32 to vector<16x16xf32>
    %171 = arith.mulf %170, %45 : vector<16x16xf32>
    %172 = arith.addf %168, %171 : vector<16x16xf32>
    %c16 = arith.constant 16 : index
    %173 = memref.load %arg1[%c16] : memref<108xf32, #tpu.memory_space<smem>>
    %174 = vector.broadcast %173 : f32 to vector<16x16xf32>
    %175 = arith.mulf %174, %9 : vector<16x16xf32>
    %176 = arith.addf %172, %175 : vector<16x16xf32>
    %c17 = arith.constant 17 : index
    %177 = memref.load %arg1[%c17] : memref<108xf32, #tpu.memory_space<smem>>
    %178 = vector.broadcast %177 : f32 to vector<16x16xf32>
    %179 = arith.mulf %178, %46 : vector<16x16xf32>
    %180 = arith.addf %176, %179 : vector<16x16xf32>
    %c24 = arith.constant 24 : index
    %181 = memref.load %arg1[%c24] : memref<108xf32, #tpu.memory_space<smem>>
    %182 = vector.broadcast %181 : f32 to vector<16x16xf32>
    %183 = arith.mulf %182, %47 : vector<16x16xf32>
    %184 = arith.addf %180, %183 : vector<16x16xf32>
    %c25 = arith.constant 25 : index
    %185 = memref.load %arg1[%c25] : memref<108xf32, #tpu.memory_space<smem>>
    %186 = vector.broadcast %185 : f32 to vector<16x16xf32>
    %187 = arith.mulf %186, %12 : vector<16x16xf32>
    %188 = arith.addf %184, %187 : vector<16x16xf32>
    %c26 = arith.constant 26 : index
    %189 = memref.load %arg1[%c26] : memref<108xf32, #tpu.memory_space<smem>>
    %190 = vector.broadcast %189 : f32 to vector<16x16xf32>
    %191 = arith.mulf %190, %48 : vector<16x16xf32>
    %192 = arith.addf %188, %191 : vector<16x16xf32>
    %c33 = arith.constant 33 : index
    %193 = memref.load %arg1[%c33] : memref<108xf32, #tpu.memory_space<smem>>
    %194 = vector.broadcast %193 : f32 to vector<16x16xf32>
    %195 = arith.mulf %194, %49 : vector<16x16xf32>
    %196 = arith.addf %192, %195 : vector<16x16xf32>
    %c34 = arith.constant 34 : index
    %197 = memref.load %arg1[%c34] : memref<108xf32, #tpu.memory_space<smem>>
    %198 = vector.broadcast %197 : f32 to vector<16x16xf32>
    %199 = arith.mulf %198, %14 : vector<16x16xf32>
    %200 = arith.addf %196, %199 : vector<16x16xf32>
    %c35 = arith.constant 35 : index
    %201 = memref.load %arg1[%c35] : memref<108xf32, #tpu.memory_space<smem>>
    %202 = vector.broadcast %201 : f32 to vector<16x16xf32>
    %203 = arith.mulf %202, %50 : vector<16x16xf32>
    %204 = arith.addf %200, %203 : vector<16x16xf32>
    %cst_44 = arith.constant dense<0.000000e+00> : vector<16x16xf32>
    %205 = tpu.matmul %30, %204, %cst_44 {dimension_numbers = #tpu.dot_dimension_numbers<[1], [0], [0], [1], [0, 0, 1, 1], [], []>} : vector<16x16xf32>, vector<16x16xf32>, vector<16x16xf32> -> vector<16x16xf32>
    %206 = arith.addf %155, %205 : vector<16x16xf32>
    %207 = math.tanh %206 : vector<16x16xf32>
    %cst_45 = arith.constant 1.000000e+00 : f32
    %208 = vector.broadcast %cst_45 : f32 to vector<16x16xf32>
    %209 = arith.addf %207, %208 : vector<16x16xf32>
    %cst_46 = arith.constant 5.000000e-01 : f32
    %210 = vector.broadcast %cst_46 : f32 to vector<16x16xf32>
    %211 = arith.mulf %209, %210 : vector<16x16xf32>
    %c0_47 = arith.constant 0 : index
    %c0_48 = arith.constant 0 : index
    %c0_49 = arith.constant 0 : index
    %c0_50 = arith.constant 0 : index
    %212 = vector.load %arg6[%c0_47, %c0_48, %c0_49, %c0_50] : memref<1x3x16x16xf32, #tpu.memory_space<vmem>>, vector<1x1x16x16xf32>
    %213 = vector.shape_cast %212 : vector<1x1x16x16xf32> to vector<16x16xf32>
    %214 = vector.shape_cast %211 : vector<16x16xf32> to vector<1x1x16x16xf32>
    tpu.vector_store %arg6[%c0_47, %c0_48, %c0_49, %c0_50], %214 {strides = array<i32>} : memref<1x3x16x16xf32, #tpu.memory_space<vmem>>, vector<1x1x16x16xf32>,
    %cst_51 = arith.constant 0.000000e+00 : f32
    %215 = vector.broadcast %cst_51 : f32 to vector<16x16xf32>
    %c1_52 = arith.constant 1 : index
    %216 = memref.load %arg2[%c1_52] : memref<3xf32, #tpu.memory_space<smem>>
    %217 = vector.broadcast %216 : f32 to vector<16x16xf32>
    %218 = arith.addf %215, %217 : vector<16x16xf32>
    %cst_53 = arith.constant 0.000000e+00 : f32
    %219 = vector.broadcast %cst_53 : f32 to vector<16x16xf32>
    %c36 = arith.constant 36 : index
    %220 = memref.load %arg1[%c36] : memref<108xf32, #tpu.memory_space<smem>>
    %221 = vector.broadcast %220 : f32 to vector<16x16xf32>
    %222 = arith.mulf %221, %43 : vector<16x16xf32>
    %223 = arith.addf %219, %222 : vector<16x16xf32>
    %c37 = arith.constant 37 : index
    %224 = memref.load %arg1[%c37] : memref<108xf32, #tpu.memory_space<smem>>
    %225 = vector.broadcast %224 : f32 to vector<16x16xf32>
    %226 = arith.mulf %225, %6 : vector<16x16xf32>
    %227 = arith.addf %223, %226 : vector<16x16xf32>
    %c38 = arith.constant 38 : index
    %228 = memref.load %arg1[%c38] : memref<108xf32, #tpu.memory_space<smem>>
    %229 = vector.broadcast %228 : f32 to vector<16x16xf32>
    %230 = arith.mulf %229, %44 : vector<16x16xf32>
    %231 = arith.addf %227, %230 : vector<16x16xf32>
    %c45 = arith.constant 45 : index
    %232 = memref.load %arg1[%c45] : memref<108xf32, #tpu.memory_space<smem>>
    %233 = vector.broadcast %232 : f32 to vector<16x16xf32>
    %234 = arith.mulf %233, %45 : vector<16x16xf32>
    %235 = arith.addf %231, %234 : vector<16x16xf32>
    %c46 = arith.constant 46 : index
    %236 = memref.load %arg1[%c46] : memref<108xf32, #tpu.memory_space<smem>>
    %237 = vector.broadcast %236 : f32 to vector<16x16xf32>
    %238 = arith.mulf %237, %9 : vector<16x16xf32>
    %239 = arith.addf %235, %238 : vector<16x16xf32>
    %c47 = arith.constant 47 : index
    %240 = memref.load %arg1[%c47] : memref<108xf32, #tpu.memory_space<smem>>
    %241 = vector.broadcast %240 : f32 to vector<16x16xf32>
    %242 = arith.mulf %241, %46 : vector<16x16xf32>
    %243 = arith.addf %239, %242 : vector<16x16xf32>
    %c54 = arith.constant 54 : index
    %244 = memref.load %arg1[%c54] : memref<108xf32, #tpu.memory_space<smem>>
    %245 = vector.broadcast %244 : f32 to vector<16x16xf32>
    %246 = arith.mulf %245, %47 : vector<16x16xf32>
    %247 = arith.addf %243, %246 : vector<16x16xf32>
    %c55 = arith.constant 55 : index
    %248 = memref.load %arg1[%c55] : memref<108xf32, #tpu.memory_space<smem>>
    %249 = vector.broadcast %248 : f32 to vector<16x16xf32>
    %250 = arith.mulf %249, %12 : vector<16x16xf32>
    %251 = arith.addf %247, %250 : vector<16x16xf32>
    %c56 = arith.constant 56 : index
    %252 = memref.load %arg1[%c56] : memref<108xf32, #tpu.memory_space<smem>>
    %253 = vector.broadcast %252 : f32 to vector<16x16xf32>
    %254 = arith.mulf %253, %48 : vector<16x16xf32>
    %255 = arith.addf %251, %254 : vector<16x16xf32>
    %c63 = arith.constant 63 : index
    %256 = memref.load %arg1[%c63] : memref<108xf32, #tpu.memory_space<smem>>
    %257 = vector.broadcast %256 : f32 to vector<16x16xf32>
    %258 = arith.mulf %257, %49 : vector<16x16xf32>
    %259 = arith.addf %255, %258 : vector<16x16xf32>
    %c64 = arith.constant 64 : index
    %260 = memref.load %arg1[%c64] : memref<108xf32, #tpu.memory_space<smem>>
    %261 = vector.broadcast %260 : f32 to vector<16x16xf32>
    %262 = arith.mulf %261, %14 : vector<16x16xf32>
    %263 = arith.addf %259, %262 : vector<16x16xf32>
    %c65 = arith.constant 65 : index
    %264 = memref.load %arg1[%c65] : memref<108xf32, #tpu.memory_space<smem>>
    %265 = vector.broadcast %264 : f32 to vector<16x16xf32>
    %266 = arith.mulf %265, %50 : vector<16x16xf32>
    %267 = arith.addf %263, %266 : vector<16x16xf32>
    %cst_54 = arith.constant dense<0.000000e+00> : vector<16x16xf32>
    %268 = tpu.matmul %24, %267, %cst_54 {dimension_numbers = #tpu.dot_dimension_numbers<[1], [0], [0], [1], [0, 0, 1, 1], [], []>} : vector<16x16xf32>, vector<16x16xf32>, vector<16x16xf32> -> vector<16x16xf32>
    %269 = arith.addf %218, %268 : vector<16x16xf32>
    %cst_55 = arith.constant 0.000000e+00 : f32
    %270 = vector.broadcast %cst_55 : f32 to vector<16x16xf32>
    %c39 = arith.constant 39 : index
    %271 = memref.load %arg1[%c39] : memref<108xf32, #tpu.memory_space<smem>>
    %272 = vector.broadcast %271 : f32 to vector<16x16xf32>
    %273 = arith.mulf %272, %43 : vector<16x16xf32>
    %274 = arith.addf %270, %273 : vector<16x16xf32>
    %c40 = arith.constant 40 : index
    %275 = memref.load %arg1[%c40] : memref<108xf32, #tpu.memory_space<smem>>
    %276 = vector.broadcast %275 : f32 to vector<16x16xf32>
    %277 = arith.mulf %276, %6 : vector<16x16xf32>
    %278 = arith.addf %274, %277 : vector<16x16xf32>
    %c41 = arith.constant 41 : index
    %279 = memref.load %arg1[%c41] : memref<108xf32, #tpu.memory_space<smem>>
    %280 = vector.broadcast %279 : f32 to vector<16x16xf32>
    %281 = arith.mulf %280, %44 : vector<16x16xf32>
    %282 = arith.addf %278, %281 : vector<16x16xf32>
    %c48 = arith.constant 48 : index
    %283 = memref.load %arg1[%c48] : memref<108xf32, #tpu.memory_space<smem>>
    %284 = vector.broadcast %283 : f32 to vector<16x16xf32>
    %285 = arith.mulf %284, %45 : vector<16x16xf32>
    %286 = arith.addf %282, %285 : vector<16x16xf32>
    %c49 = arith.constant 49 : index
    %287 = memref.load %arg1[%c49] : memref<108xf32, #tpu.memory_space<smem>>
    %288 = vector.broadcast %287 : f32 to vector<16x16xf32>
    %289 = arith.mulf %288, %9 : vector<16x16xf32>
    %290 = arith.addf %286, %289 : vector<16x16xf32>
    %c50 = arith.constant 50 : index
    %291 = memref.load %arg1[%c50] : memref<108xf32, #tpu.memory_space<smem>>
    %292 = vector.broadcast %291 : f32 to vector<16x16xf32>
    %293 = arith.mulf %292, %46 : vector<16x16xf32>
    %294 = arith.addf %290, %293 : vector<16x16xf32>
    %c57 = arith.constant 57 : index
    %295 = memref.load %arg1[%c57] : memref<108xf32, #tpu.memory_space<smem>>
    %296 = vector.broadcast %295 : f32 to vector<16x16xf32>
    %297 = arith.mulf %296, %47 : vector<16x16xf32>
    %298 = arith.addf %294, %297 : vector<16x16xf32>
    %c58 = arith.constant 58 : index
    %299 = memref.load %arg1[%c58] : memref<108xf32, #tpu.memory_space<smem>>
    %300 = vector.broadcast %299 : f32 to vector<16x16xf32>
    %301 = arith.mulf %300, %12 : vector<16x16xf32>
    %302 = arith.addf %298, %301 : vector<16x16xf32>
    %c59 = arith.constant 59 : index
    %303 = memref.load %arg1[%c59] : memref<108xf32, #tpu.memory_space<smem>>
    %304 = vector.broadcast %303 : f32 to vector<16x16xf32>
    %305 = arith.mulf %304, %48 : vector<16x16xf32>
    %306 = arith.addf %302, %305 : vector<16x16xf32>
    %c66 = arith.constant 66 : index
    %307 = memref.load %arg1[%c66] : memref<108xf32, #tpu.memory_space<smem>>
    %308 = vector.broadcast %307 : f32 to vector<16x16xf32>
    %309 = arith.mulf %308, %49 : vector<16x16xf32>
    %310 = arith.addf %306, %309 : vector<16x16xf32>
    %c67 = arith.constant 67 : index
    %311 = memref.load %arg1[%c67] : memref<108xf32, #tpu.memory_space<smem>>
    %312 = vector.broadcast %311 : f32 to vector<16x16xf32>
    %313 = arith.mulf %312, %14 : vector<16x16xf32>
    %314 = arith.addf %310, %313 : vector<16x16xf32>
    %c68 = arith.constant 68 : index
    %315 = memref.load %arg1[%c68] : memref<108xf32, #tpu.memory_space<smem>>
    %316 = vector.broadcast %315 : f32 to vector<16x16xf32>
    %317 = arith.mulf %316, %50 : vector<16x16xf32>
    %318 = arith.addf %314, %317 : vector<16x16xf32>
    %319 = arith.addf %269, %318 : vector<16x16xf32>
    %cst_56 = arith.constant 0.000000e+00 : f32
    %320 = vector.broadcast %cst_56 : f32 to vector<16x16xf32>
    %c42 = arith.constant 42 : index
    %321 = memref.load %arg1[%c42] : memref<108xf32, #tpu.memory_space<smem>>
    %322 = vector.broadcast %321 : f32 to vector<16x16xf32>
    %323 = arith.mulf %322, %43 : vector<16x16xf32>
    %324 = arith.addf %320, %323 : vector<16x16xf32>
    %c43 = arith.constant 43 : index
    %325 = memref.load %arg1[%c43] : memref<108xf32, #tpu.memory_space<smem>>
    %326 = vector.broadcast %325 : f32 to vector<16x16xf32>
    %327 = arith.mulf %326, %6 : vector<16x16xf32>
    %328 = arith.addf %324, %327 : vector<16x16xf32>
    %c44 = arith.constant 44 : index
    %329 = memref.load %arg1[%c44] : memref<108xf32, #tpu.memory_space<smem>>
    %330 = vector.broadcast %329 : f32 to vector<16x16xf32>
    %331 = arith.mulf %330, %44 : vector<16x16xf32>
    %332 = arith.addf %328, %331 : vector<16x16xf32>
    %c51 = arith.constant 51 : index
    %333 = memref.load %arg1[%c51] : memref<108xf32, #tpu.memory_space<smem>>
    %334 = vector.broadcast %333 : f32 to vector<16x16xf32>
    %335 = arith.mulf %334, %45 : vector<16x16xf32>
    %336 = arith.addf %332, %335 : vector<16x16xf32>
    %c52 = arith.constant 52 : index
    %337 = memref.load %arg1[%c52] : memref<108xf32, #tpu.memory_space<smem>>
    %338 = vector.broadcast %337 : f32 to vector<16x16xf32>
    %339 = arith.mulf %338, %9 : vector<16x16xf32>
    %340 = arith.addf %336, %339 : vector<16x16xf32>
    %c53 = arith.constant 53 : index
    %341 = memref.load %arg1[%c53] : memref<108xf32, #tpu.memory_space<smem>>
    %342 = vector.broadcast %341 : f32 to vector<16x16xf32>
    %343 = arith.mulf %342, %46 : vector<16x16xf32>
    %344 = arith.addf %340, %343 : vector<16x16xf32>
    %c60 = arith.constant 60 : index
    %345 = memref.load %arg1[%c60] : memref<108xf32, #tpu.memory_space<smem>>
    %346 = vector.broadcast %345 : f32 to vector<16x16xf32>
    %347 = arith.mulf %346, %47 : vector<16x16xf32>
    %348 = arith.addf %344, %347 : vector<16x16xf32>
    %c61 = arith.constant 61 : index
    %349 = memref.load %arg1[%c61] : memref<108xf32, #tpu.memory_space<smem>>
    %350 = vector.broadcast %349 : f32 to vector<16x16xf32>
    %351 = arith.mulf %350, %12 : vector<16x16xf32>
    %352 = arith.addf %348, %351 : vector<16x16xf32>
    %c62 = arith.constant 62 : index
    %353 = memref.load %arg1[%c62] : memref<108xf32, #tpu.memory_space<smem>>
    %354 = vector.broadcast %353 : f32 to vector<16x16xf32>
    %355 = arith.mulf %354, %48 : vector<16x16xf32>
    %356 = arith.addf %352, %355 : vector<16x16xf32>
    %c69 = arith.constant 69 : index
    %357 = memref.load %arg1[%c69] : memref<108xf32, #tpu.memory_space<smem>>
    %358 = vector.broadcast %357 : f32 to vector<16x16xf32>
    %359 = arith.mulf %358, %49 : vector<16x16xf32>
    %360 = arith.addf %356, %359 : vector<16x16xf32>
    %c70 = arith.constant 70 : index
    %361 = memref.load %arg1[%c70] : memref<108xf32, #tpu.memory_space<smem>>
    %362 = vector.broadcast %361 : f32 to vector<16x16xf32>
    %363 = arith.mulf %362, %14 : vector<16x16xf32>
    %364 = arith.addf %360, %363 : vector<16x16xf32>
    %c71 = arith.constant 71 : index
    %365 = memref.load %arg1[%c71] : memref<108xf32, #tpu.memory_space<smem>>
    %366 = vector.broadcast %365 : f32 to vector<16x16xf32>
    %367 = arith.mulf %366, %50 : vector<16x16xf32>
    %368 = arith.addf %364, %367 : vector<16x16xf32>
    %cst_57 = arith.constant dense<0.000000e+00> : vector<16x16xf32>
    %369 = tpu.matmul %30, %368, %cst_57 {dimension_numbers = #tpu.dot_dimension_numbers<[1], [0], [0], [1], [0, 0, 1, 1], [], []>} : vector<16x16xf32>, vector<16x16xf32>, vector<16x16xf32> -> vector<16x16xf32>
    %370 = arith.addf %319, %369 : vector<16x16xf32>
    %371 = math.tanh %370 : vector<16x16xf32>
    %cst_58 = arith.constant 1.000000e+00 : f32
    %372 = vector.broadcast %cst_58 : f32 to vector<16x16xf32>
    %373 = arith.addf %371, %372 : vector<16x16xf32>
    %cst_59 = arith.constant 5.000000e-01 : f32
    %374 = vector.broadcast %cst_59 : f32 to vector<16x16xf32>
    %375 = arith.mulf %373, %374 : vector<16x16xf32>
    %c0_60 = arith.constant 0 : index
    %c1_61 = arith.constant 1 : index
    %c0_62 = arith.constant 0 : index
    %c0_63 = arith.constant 0 : index
    %376 = vector.load %arg6[%c0_60, %c1_61, %c0_62, %c0_63] : memref<1x3x16x16xf32, #tpu.memory_space<vmem>>, vector<1x1x16x16xf32>
    %377 = vector.shape_cast %376 : vector<1x1x16x16xf32> to vector<16x16xf32>
    %378 = vector.shape_cast %375 : vector<16x16xf32> to vector<1x1x16x16xf32>
    tpu.vector_store %arg6[%c0_60, %c1_61, %c0_62, %c0_63], %378 {strides = array<i32>} : memref<1x3x16x16xf32, #tpu.memory_space<vmem>>, vector<1x1x16x16xf32>,
    %cst_64 = arith.constant 0.000000e+00 : f32
    %379 = vector.broadcast %cst_64 : f32 to vector<16x16xf32>
    %c2_65 = arith.constant 2 : index
    %380 = memref.load %arg2[%c2_65] : memref<3xf32, #tpu.memory_space<smem>>
    %381 = vector.broadcast %380 : f32 to vector<16x16xf32>
    %382 = arith.addf %379, %381 : vector<16x16xf32>
    %cst_66 = arith.constant 0.000000e+00 : f32
    %383 = vector.broadcast %cst_66 : f32 to vector<16x16xf32>
    %c72 = arith.constant 72 : index
    %384 = memref.load %arg1[%c72] : memref<108xf32, #tpu.memory_space<smem>>
    %385 = vector.broadcast %384 : f32 to vector<16x16xf32>
    %386 = arith.mulf %385, %43 : vector<16x16xf32>
    %387 = arith.addf %383, %386 : vector<16x16xf32>
    %c73 = arith.constant 73 : index
    %388 = memref.load %arg1[%c73] : memref<108xf32, #tpu.memory_space<smem>>
    %389 = vector.broadcast %388 : f32 to vector<16x16xf32>
    %390 = arith.mulf %389, %6 : vector<16x16xf32>
    %391 = arith.addf %387, %390 : vector<16x16xf32>
    %c74 = arith.constant 74 : index
    %392 = memref.load %arg1[%c74] : memref<108xf32, #tpu.memory_space<smem>>
    %393 = vector.broadcast %392 : f32 to vector<16x16xf32>
    %394 = arith.mulf %393, %44 : vector<16x16xf32>
    %395 = arith.addf %391, %394 : vector<16x16xf32>
    %c81 = arith.constant 81 : index
    %396 = memref.load %arg1[%c81] : memref<108xf32, #tpu.memory_space<smem>>
    %397 = vector.broadcast %396 : f32 to vector<16x16xf32>
    %398 = arith.mulf %397, %45 : vector<16x16xf32>
    %399 = arith.addf %395, %398 : vector<16x16xf32>
    %c82 = arith.constant 82 : index
    %400 = memref.load %arg1[%c82] : memref<108xf32, #tpu.memory_space<smem>>
    %401 = vector.broadcast %400 : f32 to vector<16x16xf32>
    %402 = arith.mulf %401, %9 : vector<16x16xf32>
    %403 = arith.addf %399, %402 : vector<16x16xf32>
    %c83 = arith.constant 83 : index
    %404 = memref.load %arg1[%c83] : memref<108xf32, #tpu.memory_space<smem>>
    %405 = vector.broadcast %404 : f32 to vector<16x16xf32>
    %406 = arith.mulf %405, %46 : vector<16x16xf32>
    %407 = arith.addf %403, %406 : vector<16x16xf32>
    %c90 = arith.constant 90 : index
    %408 = memref.load %arg1[%c90] : memref<108xf32, #tpu.memory_space<smem>>
    %409 = vector.broadcast %408 : f32 to vector<16x16xf32>
    %410 = arith.mulf %409, %47 : vector<16x16xf32>
    %411 = arith.addf %407, %410 : vector<16x16xf32>
    %c91 = arith.constant 91 : index
    %412 = memref.load %arg1[%c91] : memref<108xf32, #tpu.memory_space<smem>>
    %413 = vector.broadcast %412 : f32 to vector<16x16xf32>
    %414 = arith.mulf %413, %12 : vector<16x16xf32>
    %415 = arith.addf %411, %414 : vector<16x16xf32>
    %c92 = arith.constant 92 : index
    %416 = memref.load %arg1[%c92] : memref<108xf32, #tpu.memory_space<smem>>
    %417 = vector.broadcast %416 : f32 to vector<16x16xf32>
    %418 = arith.mulf %417, %48 : vector<16x16xf32>
    %419 = arith.addf %415, %418 : vector<16x16xf32>
    %c99 = arith.constant 99 : index
    %420 = memref.load %arg1[%c99] : memref<108xf32, #tpu.memory_space<smem>>
    %421 = vector.broadcast %420 : f32 to vector<16x16xf32>
    %422 = arith.mulf %421, %49 : vector<16x16xf32>
    %423 = arith.addf %419, %422 : vector<16x16xf32>
    %c100 = arith.constant 100 : index
    %424 = memref.load %arg1[%c100] : memref<108xf32, #tpu.memory_space<smem>>
    %425 = vector.broadcast %424 : f32 to vector<16x16xf32>
    %426 = arith.mulf %425, %14 : vector<16x16xf32>
    %427 = arith.addf %423, %426 : vector<16x16xf32>
    %c101 = arith.constant 101 : index
    %428 = memref.load %arg1[%c101] : memref<108xf32, #tpu.memory_space<smem>>
    %429 = vector.broadcast %428 : f32 to vector<16x16xf32>
    %430 = arith.mulf %429, %50 : vector<16x16xf32>
    %431 = arith.addf %427, %430 : vector<16x16xf32>
    %cst_67 = arith.constant dense<0.000000e+00> : vector<16x16xf32>
    %432 = tpu.matmul %24, %431, %cst_67 {dimension_numbers = #tpu.dot_dimension_numbers<[1], [0], [0], [1], [0, 0, 1, 1], [], []>} : vector<16x16xf32>, vector<16x16xf32>, vector<16x16xf32> -> vector<16x16xf32>
    %433 = arith.addf %382, %432 : vector<16x16xf32>
    %cst_68 = arith.constant 0.000000e+00 : f32
    %434 = vector.broadcast %cst_68 : f32 to vector<16x16xf32>
    %c75 = arith.constant 75 : index
    %435 = memref.load %arg1[%c75] : memref<108xf32, #tpu.memory_space<smem>>
    %436 = vector.broadcast %435 : f32 to vector<16x16xf32>
    %437 = arith.mulf %436, %43 : vector<16x16xf32>
    %438 = arith.addf %434, %437 : vector<16x16xf32>
    %c76 = arith.constant 76 : index
    %439 = memref.load %arg1[%c76] : memref<108xf32, #tpu.memory_space<smem>>
    %440 = vector.broadcast %439 : f32 to vector<16x16xf32>
    %441 = arith.mulf %440, %6 : vector<16x16xf32>
    %442 = arith.addf %438, %441 : vector<16x16xf32>
    %c77 = arith.constant 77 : index
    %443 = memref.load %arg1[%c77] : memref<108xf32, #tpu.memory_space<smem>>
    %444 = vector.broadcast %443 : f32 to vector<16x16xf32>
    %445 = arith.mulf %444, %44 : vector<16x16xf32>
    %446 = arith.addf %442, %445 : vector<16x16xf32>
    %c84 = arith.constant 84 : index
    %447 = memref.load %arg1[%c84] : memref<108xf32, #tpu.memory_space<smem>>
    %448 = vector.broadcast %447 : f32 to vector<16x16xf32>
    %449 = arith.mulf %448, %45 : vector<16x16xf32>
    %450 = arith.addf %446, %449 : vector<16x16xf32>
    %c85 = arith.constant 85 : index
    %451 = memref.load %arg1[%c85] : memref<108xf32, #tpu.memory_space<smem>>
    %452 = vector.broadcast %451 : f32 to vector<16x16xf32>
    %453 = arith.mulf %452, %9 : vector<16x16xf32>
    %454 = arith.addf %450, %453 : vector<16x16xf32>
    %c86 = arith.constant 86 : index
    %455 = memref.load %arg1[%c86] : memref<108xf32, #tpu.memory_space<smem>>
    %456 = vector.broadcast %455 : f32 to vector<16x16xf32>
    %457 = arith.mulf %456, %46 : vector<16x16xf32>
    %458 = arith.addf %454, %457 : vector<16x16xf32>
    %c93 = arith.constant 93 : index
    %459 = memref.load %arg1[%c93] : memref<108xf32, #tpu.memory_space<smem>>
    %460 = vector.broadcast %459 : f32 to vector<16x16xf32>
    %461 = arith.mulf %460, %47 : vector<16x16xf32>
    %462 = arith.addf %458, %461 : vector<16x16xf32>
    %c94 = arith.constant 94 : index
    %463 = memref.load %arg1[%c94] : memref<108xf32, #tpu.memory_space<smem>>
    %464 = vector.broadcast %463 : f32 to vector<16x16xf32>
    %465 = arith.mulf %464, %12 : vector<16x16xf32>
    %466 = arith.addf %462, %465 : vector<16x16xf32>
    %c95 = arith.constant 95 : index
    %467 = memref.load %arg1[%c95] : memref<108xf32, #tpu.memory_space<smem>>
    %468 = vector.broadcast %467 : f32 to vector<16x16xf32>
    %469 = arith.mulf %468, %48 : vector<16x16xf32>
    %470 = arith.addf %466, %469 : vector<16x16xf32>
    %c102 = arith.constant 102 : index
    %471 = memref.load %arg1[%c102] : memref<108xf32, #tpu.memory_space<smem>>
    %472 = vector.broadcast %471 : f32 to vector<16x16xf32>
    %473 = arith.mulf %472, %49 : vector<16x16xf32>
    %474 = arith.addf %470, %473 : vector<16x16xf32>
    %c103 = arith.constant 103 : index
    %475 = memref.load %arg1[%c103] : memref<108xf32, #tpu.memory_space<smem>>
    %476 = vector.broadcast %475 : f32 to vector<16x16xf32>
    %477 = arith.mulf %476, %14 : vector<16x16xf32>
    %478 = arith.addf %474, %477 : vector<16x16xf32>
    %c104 = arith.constant 104 : index
    %479 = memref.load %arg1[%c104] : memref<108xf32, #tpu.memory_space<smem>>
    %480 = vector.broadcast %479 : f32 to vector<16x16xf32>
    %481 = arith.mulf %480, %50 : vector<16x16xf32>
    %482 = arith.addf %478, %481 : vector<16x16xf32>
    %483 = arith.addf %433, %482 : vector<16x16xf32>
    %cst_69 = arith.constant 0.000000e+00 : f32
    %484 = vector.broadcast %cst_69 : f32 to vector<16x16xf32>
    %c78 = arith.constant 78 : index
    %485 = memref.load %arg1[%c78] : memref<108xf32, #tpu.memory_space<smem>>
    %486 = vector.broadcast %485 : f32 to vector<16x16xf32>
    %487 = arith.mulf %486, %43 : vector<16x16xf32>
    %488 = arith.addf %484, %487 : vector<16x16xf32>
    %c79 = arith.constant 79 : index
    %489 = memref.load %arg1[%c79] : memref<108xf32, #tpu.memory_space<smem>>
    %490 = vector.broadcast %489 : f32 to vector<16x16xf32>
    %491 = arith.mulf %490, %6 : vector<16x16xf32>
    %492 = arith.addf %488, %491 : vector<16x16xf32>
    %c80 = arith.constant 80 : index
    %493 = memref.load %arg1[%c80] : memref<108xf32, #tpu.memory_space<smem>>
    %494 = vector.broadcast %493 : f32 to vector<16x16xf32>
    %495 = arith.mulf %494, %44 : vector<16x16xf32>
    %496 = arith.addf %492, %495 : vector<16x16xf32>
    %c87 = arith.constant 87 : index
    %497 = memref.load %arg1[%c87] : memref<108xf32, #tpu.memory_space<smem>>
    %498 = vector.broadcast %497 : f32 to vector<16x16xf32>
    %499 = arith.mulf %498, %45 : vector<16x16xf32>
    %500 = arith.addf %496, %499 : vector<16x16xf32>
    %c88 = arith.constant 88 : index
    %501 = memref.load %arg1[%c88] : memref<108xf32, #tpu.memory_space<smem>>
    %502 = vector.broadcast %501 : f32 to vector<16x16xf32>
    %503 = arith.mulf %502, %9 : vector<16x16xf32>
    %504 = arith.addf %500, %503 : vector<16x16xf32>
    %c89 = arith.constant 89 : index
    %505 = memref.load %arg1[%c89] : memref<108xf32, #tpu.memory_space<smem>>
    %506 = vector.broadcast %505 : f32 to vector<16x16xf32>
    %507 = arith.mulf %506, %46 : vector<16x16xf32>
    %508 = arith.addf %504, %507 : vector<16x16xf32>
    %c96 = arith.constant 96 : index
    %509 = memref.load %arg1[%c96] : memref<108xf32, #tpu.memory_space<smem>>
    %510 = vector.broadcast %509 : f32 to vector<16x16xf32>
    %511 = arith.mulf %510, %47 : vector<16x16xf32>
    %512 = arith.addf %508, %511 : vector<16x16xf32>
    %c97 = arith.constant 97 : index
    %513 = memref.load %arg1[%c97] : memref<108xf32, #tpu.memory_space<smem>>
    %514 = vector.broadcast %513 : f32 to vector<16x16xf32>
    %515 = arith.mulf %514, %12 : vector<16x16xf32>
    %516 = arith.addf %512, %515 : vector<16x16xf32>
    %c98 = arith.constant 98 : index
    %517 = memref.load %arg1[%c98] : memref<108xf32, #tpu.memory_space<smem>>
    %518 = vector.broadcast %517 : f32 to vector<16x16xf32>
    %519 = arith.mulf %518, %48 : vector<16x16xf32>
    %520 = arith.addf %516, %519 : vector<16x16xf32>
    %c105 = arith.constant 105 : index
    %521 = memref.load %arg1[%c105] : memref<108xf32, #tpu.memory_space<smem>>
    %522 = vector.broadcast %521 : f32 to vector<16x16xf32>
    %523 = arith.mulf %522, %49 : vector<16x16xf32>
    %524 = arith.addf %520, %523 : vector<16x16xf32>
    %c106 = arith.constant 106 : index
    %525 = memref.load %arg1[%c106] : memref<108xf32, #tpu.memory_space<smem>>
    %526 = vector.broadcast %525 : f32 to vector<16x16xf32>
    %527 = arith.mulf %526, %14 : vector<16x16xf32>
    %528 = arith.addf %524, %527 : vector<16x16xf32>
    %c107 = arith.constant 107 : index
    %529 = memref.load %arg1[%c107] : memref<108xf32, #tpu.memory_space<smem>>
    %530 = vector.broadcast %529 : f32 to vector<16x16xf32>
    %531 = arith.mulf %530, %50 : vector<16x16xf32>
    %532 = arith.addf %528, %531 : vector<16x16xf32>
    %cst_70 = arith.constant dense<0.000000e+00> : vector<16x16xf32>
    %533 = tpu.matmul %30, %532, %cst_70 {dimension_numbers = #tpu.dot_dimension_numbers<[1], [0], [0], [1], [0, 0, 1, 1], [], []>} : vector<16x16xf32>, vector<16x16xf32>, vector<16x16xf32> -> vector<16x16xf32>
    %534 = arith.addf %483, %533 : vector<16x16xf32>
    %535 = math.tanh %534 : vector<16x16xf32>
    %cst_71 = arith.constant 1.000000e+00 : f32
    %536 = vector.broadcast %cst_71 : f32 to vector<16x16xf32>
    %537 = arith.addf %535, %536 : vector<16x16xf32>
    %cst_72 = arith.constant 5.000000e-01 : f32
    %538 = vector.broadcast %cst_72 : f32 to vector<16x16xf32>
    %539 = arith.mulf %537, %538 : vector<16x16xf32>
    %c0_73 = arith.constant 0 : index
    %c2_74 = arith.constant 2 : index
    %c0_75 = arith.constant 0 : index
    %c0_76 = arith.constant 0 : index
    %540 = vector.load %arg6[%c0_73, %c2_74, %c0_75, %c0_76] : memref<1x3x16x16xf32, #tpu.memory_space<vmem>>, vector<1x1x16x16xf32>
    %541 = vector.shape_cast %540 : vector<1x1x16x16xf32> to vector<16x16xf32>
    %542 = vector.shape_cast %539 : vector<16x16xf32> to vector<1x1x16x16xf32>
    tpu.vector_store %arg6[%c0_73, %c2_74, %c0_75, %c0_76], %542 {strides = array<i32>} : memref<1x3x16x16xf32, #tpu.memory_space<vmem>>, vector<1x1x16x16xf32>,
    return
  }
  func.func @transform_0(%arg0: i32) -> i32 {
    %c0_i32 = arith.constant 0 : i32
    %c0_i32_0 = arith.constant 0 : i32
    return %c0_i32 : i32
  }
  func.func @transform_1(%arg0: i32) -> i32 {
    %c0_i32 = arith.constant 0 : i32
    %c0_i32_0 = arith.constant 0 : i32
    return %c0_i32 : i32
  }
  func.func @transform_2(%arg0: i32) -> (i32, i32, i32, i32) {
    %c0_i32 = arith.constant 0 : i32
    %c0_i32_0 = arith.constant 0 : i32
    %c0_i32_1 = arith.constant 0 : i32
    %c0_i32_2 = arith.constant 0 : i32
    return %arg0, %c0_i32, %c0_i32_0, %c0_i32_1 : i32, i32, i32, i32
  }
  func.func @transform_3(%arg0: i32) -> (i32, i32, i32, i32) {
    %c0_i32 = arith.constant 0 : i32
    %c0_i32_0 = arith.constant 0 : i32
    %c0_i32_1 = arith.constant 0 : i32
    %c0_i32_2 = arith.constant 0 : i32
    return %arg0, %c0_i32, %c0_i32_0, %c0_i32_1 : i32, i32, i32, i32
  }
  func.func @transform_4(%arg0: i32) -> (i32, i32, i32, i32) {
    %c0_i32 = arith.constant 0 : i32
    %c0_i32_0 = arith.constant 0 : i32
    %c0_i32_1 = arith.constant 0 : i32
    %c0_i32_2 = arith.constant 0 : i32
    return %arg0, %c0_i32, %c0_i32_0, %c0_i32_1 : i32, i32, i32, i32
  }
  func.func @transform_5(%arg0: i32) -> (i32, i32, i32, i32) {
    %c0_i32 = arith.constant 0 : i32
    %c0_i32_0 = arith.constant 0 : i32
    %c0_i32_1 = arith.constant 0 : i32
    %c0_i32_2 = arith.constant 0 : i32
    return %arg0, %c0_i32, %c0_i32_0, %c0_i32_1 : i32, i32, i32, i32
  }
}

</mosaic_0001>

<llo_original>
// kernel: inpainting_model_forward.1
$region0: #{inpainting_model_forward.1}
  #allocation0 [shape = 'u32[]', space=smem, size = 0x4, offset = 0x4, fixed_abs, tag = 'smem constant byte address 0x4 - core index']
  #allocation1 [shape = 'u32[72,128]{1,0:T(1,128)}', space=vmem, size = 0x9000, scoped, tag = 'internal scratch']
  %s0 = inlined_call_operand.vmem [shape: f32[108], index: 0, kind: input, shape index: {}]
  %s1 = inlined_call_operand.vmem [shape: f32[3], index: 1, kind: input, shape index: {}]
  %s2 = inlined_call_operand.vmem [shape: f32[2,3,16,16], index: 2, kind: input, shape index: {}]
  %s3 = inlined_call_operand.vmem [shape: f32[2,1,16,16], index: 3, kind: input, shape index: {}]
  %s4 = inlined_call_operand.hbm [shape: f32[2,1,16,16], index: 4, kind: input, shape index: {}]
  %s5 = inlined_call_operand.hbm [shape: f32[2,3,16,16], index: 5, kind: output, shape index: {}]
  %s6 = sld [smem:[#allocation0]]
  $region65: #{inpainting_model_forward.1} parent=0
    _
  %s8 = ssub.s32 1, %s6
  %s9 = scalar_select 0, %s8, %s6
  $region1: #{inpainting_model_forward.1} parent=0
    #allocation2 [shape = 'u8[512]{0}', space=smem, size = 0x200, scoped, tag = 'input window, operand 0, single buffered']
    #allocation3 [shape = 's32[2]{0}', space=sflag, size = 0x8, scoped, tag = 'scoped memory for inpainting_model_forward.1']
    #allocation4 [shape = 's32[2]{0}', space=sflag, size = 0x8, scoped, tag = 'scoped memory for inpainting_model_forward.1']
    #allocation5 [shape = 's32[2]{0}', space=sflag, size = 0x8, scoped, tag = 'scoped memory for inpainting_model_forward.1']
    #allocation6 [shape = 'u8[512]{0}', space=smem, size = 0x200, scoped, tag = 'input window, operand 1, single buffered']
    #allocation7 [shape = 's32[1]{0}', space=sflag, size = 0x4, scoped, tag = 'scoped memory for inpainting_model_forward.1']
    #allocation8 [shape = 'u8[16384]{0}', space=vmem, size = 0x4000, scoped, tag = 'input window, operand 4']
    #allocation9 [shape = 'u8[49152]{0}', space=vmem, size = 0xc000, scoped, tag = 'output window, operand 0']
    %10 = vsyncpa [#allocation5], 0
    %11 = vsyncpa [#allocation7], 0
    %12 = vsyncpa [#allocation3], 0
    %s13 = scalar_lea.sflag [#allocation3], 1
    %14 = vsyncpa %s13, 0
    %15 = vsyncpa [#allocation4], 0
    %s16 = scalar_lea.sflag [#allocation4], 1
    %17 = vsyncpa %s16, 0
    loop: start=0, step=1, limit=4
    $region2: #{inpainting_model_forward.1} parent=1 // loop_pre_header
      _
    $region3: #{inpainting_model_forward.1} parent=1 // loop_header
      %s19 = sphi 0, %s23
      %p20 = scmp.ge.s32.totalorder %s19, 4
      %s27 = sphi 0, %s27
      %s29 = sphi 0, %s27
      %s30 = sphi 0, %s29
      %s44 = sphi 0, %s30
      %s48 = sphi 0, %s48
      %s50 = sphi 0, %s48
      %s51 = sphi 0, %s50
      %s65 = sphi 0, %s51
      %s71 = sphi 0, %s73
      %s74 = sphi 0, %s71
      %s75 = sphi 0, %s74
      %s91 = sphi 0, %s75
      %s97 = sphi 0, %s99
      %s100 = sphi 0, %s97
      %s101 = sphi 0, %s100
      %s117 = sphi 0, %s101
      %s123 = sphi 0, %s125
      %s126 = sphi 0, %s123
      %s127 = sphi 0, %s126
      %s143 = sphi 0, %s127
      %s149 = sphi 0, %s151
      %s152 = sphi 0, %s149
      %s153 = sphi 0, %s152
      %s169 = sphi 0, %s153
    $region4: #{inpainting_model_forward.1} parent=1 // loop_header_branch
      %22 = sbr.rel (%p20) target = $region8
    $region5: #{inpainting_model_forward.1} parent=1 // loop_body
      %s24 = ssub.s32 %s19, 1
      %s25 = ssub.s32 %s19, 2
      %s26 = sadd.s32 %s19, 1
      %s28 = sadd.s32 %s27, 1
      %p31 = scmp.eq.s32.totalorder %s19, 1
      %p32 = scmp.ne.s32.totalorder %s27, %s29
      %p33 = scmp.eq.s32.totalorder %s19, 0
      %p34 = por %p32, %p33
      %p35 = scmp.ne.s32.totalorder %s27, %s29
      %p36 = scmp.eq.s32.totalorder %s24, 1
      %p37 = por %p35, %p36
      %p38 = scmp.ne.s32.totalorder %s29, %s30
      %p39 = scmp.eq.s32.totalorder %s24, 0
      %p40 = por %p38, %p39
      %p41 = scmp.ne.s32.totalorder %s29, %s30
      %p42 = scmp.eq.s32.totalorder %s25, 1
      %p43 = por %p41, %p42
      %p45 = scmp.ne.s32.totalorder %s30, %s44
      %p46 = scmp.eq.s32.totalorder %s25, 0
      %p47 = por %p45, %p46
      %s49 = sadd.s32 %s48, 1
      %p52 = scmp.eq.s32.totalorder %s19, 1
      %p53 = scmp.ne.s32.totalorder %s48, %s50
      %p54 = scmp.eq.s32.totalorder %s19, 0
      %p55 = por %p53, %p54
      %p56 = scmp.ne.s32.totalorder %s48, %s50
      %p57 = scmp.eq.s32.totalorder %s24, 1
      %p58 = por %p56, %p57
      %p59 = scmp.ne.s32.totalorder %s50, %s51
      %p60 = scmp.eq.s32.totalorder %s24, 0
      %p61 = por %p59, %p60
      %p62 = scmp.ne.s32.totalorder %s50, %s51
      %p63 = scmp.eq.s32.totalorder %s25, 1
      %p64 = por %p62, %p63
      %p66 = scmp.ne.s32.totalorder %s51, %s65
      %p67 = scmp.eq.s32.totalorder %s25, 0
      %p68 = por %p66, %p67
      %s69 = ssub.s32 %s19, %s26
      %p70 = scmp.eq.s32.totalorder %s69, 0
      %s72 = sadd.s32 %s71, 1
      %s73 = scalar_select %p70, %s71, %s72
      %p76 = pneg %p70
      %p77 = scmp.eq.s32.totalorder %s19, 1
      %p78 = por %p76, %p77
      %p79 = scmp.ne.s32.totalorder %s71, %s74
      %p80 = scmp.eq.s32.totalorder %s19, 0
      %p81 = por %p79, %p80
      %p82 = scmp.ne.s32.totalorder %s71, %s74
      %p83 = scmp.eq.s32.totalorder %s24, 1
      %p84 = por %p82, %p83
      %p85 = scmp.ne.s32.totalorder %s74, %s75
      %p86 = scmp.eq.s32.totalorder %s24, 0
      %p87 = por %p85, %p86
      %p88 = scmp.ne.s32.totalorder %s74, %s75
      %p89 = scmp.eq.s32.totalorder %s25, 1
      %p90 = por %p88, %p89
      %p92 = scmp.ne.s32.totalorder %s75, %s91
      %p93 = scmp.eq.s32.totalorder %s25, 0
      %p94 = por %p92, %p93
      %s95 = ssub.s32 %s19, %s26
      %p96 = scmp.eq.s32.totalorder %s95, 0
      %s98 = sadd.s32 %s97, 1
      %s99 = scalar_select %p96, %s97, %s98
      %p102 = pneg %p96
      %p103 = scmp.eq.s32.totalorder %s19, 1
      %p104 = por %p102, %p103
      %p105 = scmp.ne.s32.totalorder %s97, %s100
      %p106 = scmp.eq.s32.totalorder %s19, 0
      %p107 = por %p105, %p106
      %p108 = scmp.ne.s32.totalorder %s97, %s100
      %p109 = scmp.eq.s32.totalorder %s24, 1
      %p110 = por %p108, %p109
      %p111 = scmp.ne.s32.totalorder %s100, %s101
      %p112 = scmp.eq.s32.totalorder %s24, 0
      %p113 = por %p111, %p112
      %p114 = scmp.ne.s32.totalorder %s100, %s101
      %p115 = scmp.eq.s32.totalorder %s25, 1
      %p116 = por %p114, %p115
      %p118 = scmp.ne.s32.totalorder %s101, %s117
      %p119 = scmp.eq.s32.totalorder %s25, 0
      %p120 = por %p118, %p119
      %s121 = ssub.s32 %s19, %s26
      %p122 = scmp.eq.s32.totalorder %s121, 0
      %s124 = sadd.s32 %s123, 1
      %s125 = scalar_select %p122, %s123, %s124
      %p128 = pneg %p122
      %p129 = scmp.eq.s32.totalorder %s19, 1
      %p130 = por %p128, %p129
      %p131 = scmp.ne.s32.totalorder %s123, %s126
      %p132 = scmp.eq.s32.totalorder %s19, 0
      %p133 = por %p131, %p132
      %p134 = scmp.ne.s32.totalorder %s123, %s126
      %p135 = scmp.eq.s32.totalorder %s24, 1
      %p136 = por %p134, %p135
      %p137 = scmp.ne.s32.totalorder %s126, %s127
      %p138 = scmp.eq.s32.totalorder %s24, 0
      %p139 = por %p137, %p138
      %p140 = scmp.ne.s32.totalorder %s126, %s127
      %p141 = scmp.eq.s32.totalorder %s25, 1
      %p142 = por %p140, %p141
      %p144 = scmp.ne.s32.totalorder %s127, %s143
      %p145 = scmp.eq.s32.totalorder %s25, 0
      %p146 = por %p144, %p145
      %s147 = ssub.s32 %s19, %s26
      %p148 = scmp.eq.s32.totalorder %s147, 0
      %s150 = sadd.s32 %s149, 1
      %s151 = scalar_select %p148, %s149, %s150
      %p154 = pneg %p148
      %p155 = scmp.eq.s32.totalorder %s19, 1
      %p156 = por %p154, %p155
      %p157 = scmp.ne.s32.totalorder %s149, %s152
      %p158 = scmp.eq.s32.totalorder %s19, 0
      %p159 = por %p157, %p158
      %p160 = scmp.ne.s32.totalorder %s149, %s152
      %p161 = scmp.eq.s32.totalorder %s24, 1
      %p162 = por %p160, %p161
      %p163 = scmp.ne.s32.totalorder %s152, %s153
      %p164 = scmp.eq.s32.totalorder %s24, 0
      %p165 = por %p163, %p164
      %p166 = scmp.ne.s32.totalorder %s152, %s153
      %p167 = scmp.eq.s32.totalorder %s25, 1
      %p168 = por %p166, %p167
      %p170 = scmp.ne.s32.totalorder %s153, %s169
      %p171 = scmp.eq.s32.totalorder %s25, 0
      %p172 = por %p170, %p171
      %p173 = scmp.le.s32.totalorder 1, %s19
      %p174 = scmp.lt.s32.totalorder %s19, 3
      %p175 = pnand %p173, %p174
      %p176 = pneg %p175
      // Predicated region
      $region9: #{inpainting_model_forward.1} parent=5 // pred_check
        _
      $region10: #{inpainting_model_forward.1} parent=5 // pred_check_branch
        %178 = sbr.rel (%p175) target = $region12
      $region11: #{inpainting_model_forward.1} parent=5 // pred_region
        %s179 = ssub.s32 %s19, 1
        // Predicated region
        $region13: #{inpainting_model_forward.1} parent=11 // pred_check
          %p180 = pneg %p40
        $region14: #{inpainting_model_forward.1} parent=11 // pred_check_branch
          %182 = sbr.rel (%p180) target = $region16
        $region15: #{inpainting_model_forward.1} parent=11 // pred_region
          %184 = vsyncadd [#allocation5], 0
          %s186 = sshll.u32 %s0, 4
          %s187 = int_to_ptr.vmem [resolvable:$true] %s186
          %189 = dma.vmem_to_smem %s187, 16, [#allocation2], [#allocation5]
        $region16: #{inpainting_model_forward.1} parent=11 // pred_fallthru
          _
        // Predicated region
        $region17: #{inpainting_model_forward.1} parent=11 // pred_check
          %p190 = pneg %p61
        $region18: #{inpainting_model_forward.1} parent=11 // pred_check_branch
          %192 = sbr.rel (%p190) target = $region20
        $region19: #{inpainting_model_forward.1} parent=11 // pred_region
          %194 = vsyncadd [#allocation7], 0
          %s196 = sshll.u32 %s1, 4
          %s197 = int_to_ptr.vmem [resolvable:$true] %s196
          %199 = dma.vmem_to_smem %s197, 16, [#allocation6], [#allocation7]
        $region20: #{inpainting_model_forward.1} parent=11 // pred_fallthru
          _
      $region12: #{inpainting_model_forward.1} parent=5 // pred_fallthru
        _
      %p200 = scmp.lt.s32.totalorder %s19, 2
      // Predicated region
      $region21: #{inpainting_model_forward.1} parent=5 // pred_check
        %p201 = pneg %p200
      $region22: #{inpainting_model_forward.1} parent=5 // pred_check_branch
        %203 = sbr.rel (%p201) target = $region24
      $region23: #{inpainting_model_forward.1} parent=5 // pred_region
        // Predicated region
        $region25: #{inpainting_model_forward.1} parent=23 // pred_check
          %p204 = pneg %p81
        $region26: #{inpainting_model_forward.1} parent=23 // pred_check_branch
          %206 = sbr.rel (%p204) target = $region28
        $region27: #{inpainting_model_forward.1} parent=23 // pred_region
          %p207 = scmp.lt.s32.totalorder %s19, 1
          %s208 = scalar_select %p207, %s19, 1
          %s209 = smul.addr %s208, 6
          %s210 = smul.addr %s209, 8
          %s211 = scalar_lea.vmem %s2, %s210
        $region28: #{inpainting_model_forward.1} parent=23 // pred_fallthru
          _
        // Predicated region
        $region29: #{inpainting_model_forward.1} parent=23 // pred_check
          %p212 = pneg %p107
        $region30: #{inpainting_model_forward.1} parent=23 // pred_check_branch
          %214 = sbr.rel (%p212) target = $region32
        $region31: #{inpainting_model_forward.1} parent=23 // pred_region
          %p215 = scmp.lt.s32.totalorder %s19, 1
          %s216 = scalar_select %p215, %s19, 1
          %s217 = smul.addr %s216, 2
          %s218 = smul.addr %s217, 8
          %s219 = scalar_lea.vmem %s3, %s218
        $region32: #{inpainting_model_forward.1} parent=23 // pred_fallthru
          _
        // Predicated region
        $region33: #{inpainting_model_forward.1} parent=23 // pred_check
          %p220 = pneg %p133
        $region34: #{inpainting_model_forward.1} parent=23 // pred_check_branch
          %222 = sbr.rel (%p220) target = $region36
        $region35: #{inpainting_model_forward.1} parent=23 // pred_region
          %s223 = sand.u32 %s123, 1
          %s224 = scalar_lea.sflag [#allocation3], %s223
          %s225 = sand.u32 %s123, 1
          %s226 = smul.addr %s225, 16
          %s227 = scalar_lea.vmem [#allocation8], %s226
          %229 = vsyncadd %s224, 0
          %s230 = smul.addr %s19, 2
          %s231 = smul.addr %s230, 8
          %s232 = scalar_lea.hbm %s4, %s231
          %s233 = sshll.u32 %s232, 4
          %s234 = int_to_ptr.hbm [resolvable:$true] %s233
          %s235 = sshll.u32 %s227, 4
          %s236 = int_to_ptr.vmem [resolvable:$true] %s235
          %241 = dma.hbm_to_vmem [thread:$0]  %s234, 256, %s236, %s224, 128, 128, 8
        $region36: #{inpainting_model_forward.1} parent=23 // pred_fallthru
          _
      $region24: #{inpainting_model_forward.1} parent=5 // pred_fallthru
        _
      %p242 = scmp.le.s32.totalorder 1, %s19
      %p243 = scmp.lt.s32.totalorder %s19, 3
      %p244 = pnand %p242, %p243
      %p245 = pneg %p244
      // Predicated region
      $region37: #{inpainting_model_forward.1} parent=5 // pred_check
        _
      $region38: #{inpainting_model_forward.1} parent=5 // pred_check_branch
        %247 = sbr.rel (%p244) target = $region40
      $region39: #{inpainting_model_forward.1} parent=5 // pred_region
        %s248 = ssub.s32 %s19, 1
        // Predicated region
        $region41: #{inpainting_model_forward.1} parent=39 // pred_check
          %p249 = pneg %p40
        $region42: #{inpainting_model_forward.1} parent=39 // pred_check_branch
          %251 = sbr.rel (%p249) target = $region44
        $region43: #{inpainting_model_forward.1} parent=39 // pred_region
          %253 = dma.done [#allocation5], 16
        $region44: #{inpainting_model_forward.1} parent=39 // pred_fallthru
          _
        // Predicated region
        $region45: #{inpainting_model_forward.1} parent=39 // pred_check
          %p254 = pneg %p61
        $region46: #{inpainting_model_forward.1} parent=39 // pred_check_branch
          %256 = sbr.rel (%p254) target = $region48
        $region47: #{inpainting_model_forward.1} parent=39 // pred_region
          %258 = dma.done [#allocation7], 16
        $region48: #{inpainting_model_forward.1} parent=39 // pred_fallthru
          _
        %s259 = sand.u32 %s126, 1
        %s260 = scalar_lea.sflag [#allocation3], %s259
        %s261 = sand.u32 %s126, 1
        %s262 = smul.addr %s261, 16
        %s263 = scalar_lea.vmem [#allocation8], %s262
        // Predicated region
        $region49: #{inpainting_model_forward.1} parent=39 // pred_check
          %p264 = pneg %p139
        $region50: #{inpainting_model_forward.1} parent=39 // pred_check_branch
          %266 = sbr.rel (%p264) target = $region52
        $region51: #{inpainting_model_forward.1} parent=39 // pred_region
          %268 = dma.done %s260, 256
        $region52: #{inpainting_model_forward.1} parent=39 // pred_fallthru
          _
        %269 = sfence
        %p270 = pneg %p40
        %p271 = pneg %p37
        %p272 = pneg %p61
        %p273 = pneg %p58
        %p274 = scmp.lt.s32.totalorder %s24, 1
        %s275 = scalar_select %p274, %s24, 1
        %s276 = smul.addr %s275, 6
        %s277 = smul.addr %s276, 8
        %s278 = scalar_lea.vmem %s2, %s277
        %p279 = pneg %p87
        %p280 = pneg %p84
        %p281 = scmp.lt.s32.totalorder %s24, 1
        %s282 = scalar_select %p281, %s24, 1
        %s283 = smul.addr %s282, 2
        %s284 = smul.addr %s283, 8
        %s285 = scalar_lea.vmem %s3, %s284
        %p286 = pneg %p113
        %p287 = pneg %p110
        %s288 = sand.u32 %s126, 1
        %s289 = scalar_lea.sflag [#allocation3], %s288
        %s290 = sand.u32 %s126, 1
        %s291 = smul.addr %s290, 16
        %s292 = scalar_lea.vmem [#allocation8], %s291
        %p293 = pneg %p139
        %p294 = pneg %p136
        %p295 = pneg %p165
        %p296 = pneg %p162
        %s297 = sand.u32 %s152, 1
        %s298 = scalar_lea.sflag [#allocation4], %s297
        %s299 = sand.u32 %s152, 1
        %s300 = smul.addr %s299, 48
        %s301 = scalar_lea.vmem [#allocation9], %s300
        %p302 = scmp.lt.s32.totalorder %s24, 1
        %s303 = scalar_select %p302, %s24, 1
        %s304 = smul.addr %s303, 6
        %s305 = smul.addr %s304, 8
        %s306 = scalar_lea.vmem %s2, %s305
        %p307 = scmp.lt.s32.totalorder %s24, 1
        %s308 = scalar_select %p307, %s24, 1
        %s309 = smul.addr %s308, 2
        %s310 = smul.addr %s309, 8
        %s311 = scalar_lea.vmem %s3, %s310
        %v312 = vld [vmem:[%s263] sm:$0xff]
        %v313 = vld [vmem:[%s263 + $0x8] sm:$0xff]
        %v314 = vsub.f32 1.0, %v312
        %v315 = vsub.f32 1.0, %v313
        %v316 = vld [vmem:[%s306] sm:$0xff]
        %v317 = vld [vmem:[%s306 + $0x8] sm:$0xff]
        %v318 = vmul.f32 %v316, %v314
        %v319 = vmul.f32 %v317, %v315
        %s320 = scalar_lea.vmem %s306, 16
        %v321 = vld [vmem:[%s320] sm:$0xff]
        %v322 = vld [vmem:[%s320 + $0x8] sm:$0xff]
        %v323 = vmul.f32 %v321, %v314
        %v324 = vmul.f32 %v322, %v315
        %s325 = scalar_lea.vmem %s306, 32
        %v326 = vld [vmem:[%s325] sm:$0xff]
        %v327 = vld [vmem:[%s325 + $0x8] sm:$0xff]
        %v328 = vmul.f32 %v326, %v314
        %v329 = vmul.f32 %v327, %v315
        %v330 = vld [vmem:[%s311] sm:$0xff]
        %v331 = vld [vmem:[%s311 + $0x8] sm:$0xff]
        %v332 = vlaneseq
        %v333 = vshrl.u32 %v332, 7
        %v334 = vadd.s32 %v333, 8
        %v335 = vlaneseq
        %v336 = vand.u32 %v335, 127
        %v337 = vadd.s32 %v333, 4294967295
        %v338 = vadd.s32 %v334, 4294967295
        %vm339 = vcmp.eq.s32.totalorder %v336, %v337
        %vm340 = vcmp.eq.s32.totalorder %v336, %v338
        %v341 = vsel %vm339, 1.0, 0.0
        %v342 = vsel %vm340, 1.0, 0.0
        %v343 = vadd.s32 %v333, 1
        %v344 = vadd.s32 %v334, 1
        %vm345 = vcmp.eq.s32.totalorder %v336, %v343
        %vm346 = vcmp.eq.s32.totalorder %v336, %v344
        %v347 = vsel %vm345, 1.0, 0.0
        %v348 = vsel %vm346, 1.0, 0.0
        %v349 = vadd.s32 %v336, 4294967295
        %vm350 = vcmp.eq.s32.totalorder %v333, %v349
        %vm351 = vcmp.eq.s32.totalorder %v334, %v349
        %v352 = vsel %vm350, 1.0, 0.0
        %v353 = vsel %vm351, 1.0, 0.0
        %v354 = vadd.s32 %v336, 1
        %vm355 = vcmp.eq.s32.totalorder %v333, %v354
        %vm356 = vcmp.eq.s32.totalorder %v334, %v354
        %v357 = vsel %vm355, 1.0, 0.0
        %v358 = vsel %vm356, 1.0, 0.0
        %vm359 = vcmask 130048
        %v361 = vsel %vm359, %v318, 0
        %v364 = vsel %vm359, %v319, 0
        %366 = vmatpush.msra.mxu0 0.0
        %367 = vmatpush.msra.mxu0 0.0
        %368 = vmatpush.msra.mxu0 0.0
        %369 = vmatpush.msra.mxu0 0.0
        %370 = vmatpush.msra.mxu0 0.0
        %371 = vmatpush.msra.mxu0 0.0
        %372 = vmatpush.msra.mxu0 0.0
        %373 = vmatpush.msra.mxu0 0.0
        %374 = vmatpush.msra.mxu0 0.0
        %375 = vmatpush.msra.mxu0 0.0
        %376 = vmatpush.msra.mxu0 0.0
        %377 = vmatpush.msra.mxu0 0.0
        %378 = vmatpush.msra.mxu0 0.0
        %379 = vmatpush.msra.mxu0 0.0
        %380 = vmatpush.msra.mxu0 %v353
        %381 = vmatpush.msra.mxu0 %v352
        %382 = vmatmul.f32.gmra.mxu0 %v361
        %v383 = vpop.f32.mrf.mxu0
        %v384 = vadd.f32 0.0, %v383
        %385 = vmatmul.f32.gmra.mxu0 %v364
        %v386 = vpop.f32.mrf.mxu0
        %v387 = vadd.f32 0.0, %v386
        %388 = vdwg.mxu0
        %389 = vmatpush.msra.mxu0 0.0
        %390 = vmatpush.msra.mxu0 0.0
        %391 = vmatpush.msra.mxu0 0.0
        %392 = vmatpush.msra.mxu0 0.0
        %393 = vmatpush.msra.mxu0 0.0
        %394 = vmatpush.msra.mxu0 0.0
        %395 = vmatpush.msra.mxu0 0.0
        %396 = vmatpush.msra.mxu0 0.0
        %397 = vmatpush.msra.mxu0 0.0
        %398 = vmatpush.msra.mxu0 0.0
        %399 = vmatpush.msra.mxu0 0.0
        %400 = vmatpush.msra.mxu0 0.0
        %401 = vmatpush.msra.mxu0 0.0
        %402 = vmatpush.msra.mxu0 0.0
        %403 = vmatpush.msra.mxu0 %v358
        %404 = vmatpush.msra.mxu0 %v357
        %405 = vmatmul.f32.gmra.mxu0 %v361
        %v406 = vpop.f32.mrf.mxu0
        %v407 = vadd.f32 0.0, %v406
        %408 = vmatmul.f32.gmra.mxu0 %v364
        %v409 = vpop.f32.mrf.mxu0
        %v410 = vadd.f32 0.0, %v409
        %411 = vdwg.mxu0
        %v413 = vsel %vm359, %v323, 0
        %v416 = vsel %vm359, %v324, 0
        %418 = vmatpush.msra.mxu0 0.0
        %419 = vmatpush.msra.mxu0 0.0
        %420 = vmatpush.msra.mxu0 0.0
        %421 = vmatpush.msra.mxu0 0.0
        %422 = vmatpush.msra.mxu0 0.0
        %423 = vmatpush.msra.mxu0 0.0
        %424 = vmatpush.msra.mxu0 0.0
        %425 = vmatpush.msra.mxu0 0.0
        %426 = vmatpush.msra.mxu0 0.0
        %427 = vmatpush.msra.mxu0 0.0
        %428 = vmatpush.msra.mxu0 0.0
        %429 = vmatpush.msra.mxu0 0.0
        %430 = vmatpush.msra.mxu0 0.0
        %431 = vmatpush.msra.mxu0 0.0
        %432 = vmatpush.msra.mxu0 %v353
        %433 = vmatpush.msra.mxu0 %v352
        %434 = vmatmul.f32.gmra.mxu0 %v413
        %v435 = vpop.f32.mrf.mxu0
        %v436 = vadd.f32 0.0, %v435
        %437 = vmatmul.f32.gmra.mxu0 %v416
        %v438 = vpop.f32.mrf.mxu0
        %v439 = vadd.f32 0.0, %v438
        %440 = vdwg.mxu0
        %441 = vmatpush.msra.mxu0 0.0
        %442 = vmatpush.msra.mxu0 0.0
        %443 = vmatpush.msra.mxu0 0.0
        %444 = vmatpush.msra.mxu0 0.0
        %445 = vmatpush.msra.mxu0 0.0
        %446 = vmatpush.msra.mxu0 0.0
        %447 = vmatpush.msra.mxu0 0.0
        %448 = vmatpush.msra.mxu0 0.0
        %449 = vmatpush.msra.mxu0 0.0
        %450 = vmatpush.msra.mxu0 0.0
        %451 = vmatpush.msra.mxu0 0.0
        %452 = vmatpush.msra.mxu0 0.0
        %453 = vmatpush.msra.mxu0 0.0
        %454 = vmatpush.msra.mxu0 0.0
        %455 = vmatpush.msra.mxu0 %v358
        %456 = vmatpush.msra.mxu0 %v357
        %457 = vmatmul.f32.gmra.mxu0 %v413
        %v458 = vpop.f32.mrf.mxu0
        %v459 = vadd.f32 0.0, %v458
        %460 = vmatmul.f32.gmra.mxu0 %v416
        %v461 = vpop.f32.mrf.mxu0
        %v462 = vadd.f32 0.0, %v461
        %463 = vdwg.mxu0
        %v465 = vsel %vm359, %v328, 0
        %v468 = vsel %vm359, %v329, 0
        %470 = vmatpush.msra.mxu0 0.0
        %471 = vmatpush.msra.mxu0 0.0
        %472 = vmatpush.msra.mxu0 0.0
        %473 = vmatpush.msra.mxu0 0.0
        %474 = vmatpush.msra.mxu0 0.0
        %475 = vmatpush.msra.mxu0 0.0
        %476 = vmatpush.msra.mxu0 0.0
        %477 = vmatpush.msra.mxu0 0.0
        %478 = vmatpush.msra.mxu0 0.0
        %479 = vmatpush.msra.mxu0 0.0
        %480 = vmatpush.msra.mxu0 0.0
        %481 = vmatpush.msra.mxu0 0.0
        %482 = vmatpush.msra.mxu0 0.0
        %483 = vmatpush.msra.mxu0 0.0
        %484 = vmatpush.msra.mxu0 %v353
        %485 = vmatpush.msra.mxu0 %v352
        %486 = vmatmul.f32.gmra.mxu0 %v465
        %v487 = vpop.f32.mrf.mxu0
        %v488 = vadd.f32 0.0, %v487
        %489 = vmatmul.f32.gmra.mxu0 %v468
        %v490 = vpop.f32.mrf.mxu0
        %v491 = vadd.f32 0.0, %v490
        %492 = vdwg.mxu0
        %493 = vmatpush.msra.mxu0 0.0
        %494 = vmatpush.msra.mxu0 0.0
        %495 = vmatpush.msra.mxu0 0.0
        %496 = vmatpush.msra.mxu0 0.0
        %497 = vmatpush.msra.mxu0 0.0
        %498 = vmatpush.msra.mxu0 0.0
        %499 = vmatpush.msra.mxu0 0.0
        %500 = vmatpush.msra.mxu0 0.0
        %501 = vmatpush.msra.mxu0 0.0
        %502 = vmatpush.msra.mxu0 0.0
        %503 = vmatpush.msra.mxu0 0.0
        %504 = vmatpush.msra.mxu0 0.0
        %505 = vmatpush.msra.mxu0 0.0
        %506 = vmatpush.msra.mxu0 0.0
        %507 = vmatpush.msra.mxu0 %v358
        %508 = vmatpush.msra.mxu0 %v357
        %509 = vmatmul.f32.gmra.mxu0 %v465
        %v510 = vpop.f32.mrf.mxu0
        %v511 = vadd.f32 0.0, %v510
        %512 = vmatmul.f32.gmra.mxu0 %v468
        %v513 = vpop.f32.mrf.mxu0
        %v514 = vadd.f32 0.0, %v513
        %515 = vdwg.mxu0
        %v517 = vsel %vm359, %v330, 0
        %v520 = vsel %vm359, %v331, 0
        %522 = vmatpush.msra.mxu0 0.0
        %523 = vmatpush.msra.mxu0 0.0
        %524 = vmatpush.msra.mxu0 0.0
        %525 = vmatpush.msra.mxu0 0.0
        %526 = vmatpush.msra.mxu0 0.0
        %527 = vmatpush.msra.mxu0 0.0
        %528 = vmatpush.msra.mxu0 0.0
        %529 = vmatpush.msra.mxu0 0.0
        %530 = vmatpush.msra.mxu0 0.0
        %531 = vmatpush.msra.mxu0 0.0
        %532 = vmatpush.msra.mxu0 0.0
        %533 = vmatpush.msra.mxu0 0.0
        %534 = vmatpush.msra.mxu0 0.0
        %535 = vmatpush.msra.mxu0 0.0
        %536 = vmatpush.msra.mxu0 %v353
        %537 = vmatpush.msra.mxu0 %v352
        %538 = vmatmul.f32.gmra.mxu0 %v517
        %v539 = vpop.f32.mrf.mxu0
        %v540 = vadd.f32 0.0, %v539
        %541 = vmatmul.f32.gmra.mxu0 %v520
        %v542 = vpop.f32.mrf.mxu0
        %v543 = vadd.f32 0.0, %v542
        %544 = vdwg.mxu0
        %545 = vmatpush.msra.mxu0 0.0
        %546 = vmatpush.msra.mxu0 0.0
        %547 = vmatpush.msra.mxu0 0.0
        %548 = vmatpush.msra.mxu0 0.0
        %549 = vmatpush.msra.mxu0 0.0
        %550 = vmatpush.msra.mxu0 0.0
        %551 = vmatpush.msra.mxu0 0.0
        %552 = vmatpush.msra.mxu0 0.0
        %553 = vmatpush.msra.mxu0 0.0
        %554 = vmatpush.msra.mxu0 0.0
        %555 = vmatpush.msra.mxu0 0.0
        %556 = vmatpush.msra.mxu0 0.0
        %557 = vmatpush.msra.mxu0 0.0
        %558 = vmatpush.msra.mxu0 0.0
        %559 = vmatpush.msra.mxu0 %v358
        %560 = vmatpush.msra.mxu0 %v357
        %561 = vmatmul.f32.gmra.mxu0 %v517
        %v562 = vpop.f32.mrf.mxu0
        %v563 = vadd.f32 0.0, %v562
        %564 = vmatmul.f32.gmra.mxu0 %v520
        %v565 = vpop.f32.mrf.mxu0
        %v566 = vadd.f32 0.0, %v565
        %567 = vdwg.mxu0
        %s568 = sld [smem:[#allocation6]]
        %v569 = vstv %s568
        %v570 = vadd.f32 %v569, 0.0
        %s571 = sld [smem:[#allocation2]]
        %v572 = vstv %s571
        %v573 = vmul.f32 %v572, %v384
        %v574 = vmul.f32 %v572, %v387
        %v575 = vadd.f32 %v573, 0.0
        %v576 = vadd.f32 %v574, 0.0
        %s577 = sld [smem:[#allocation2 + $0x1]]
        %v578 = vstv %s577
        %v579 = vmul.f32 %v578, %v318
        %v580 = vmul.f32 %v578, %v319
        %v581 = vadd.f32 %v575, %v579
        %v582 = vadd.f32 %v576, %v580
        %s583 = sld [smem:[#allocation2 + $0x2]]
        %v584 = vstv %s583
        %v585 = vmul.f32 %v584, %v407
        %v586 = vmul.f32 %v584, %v410
        %v587 = vadd.f32 %v581, %v585
        %v588 = vadd.f32 %v582, %v586
        %s589 = sld [smem:[#allocation2 + $0x9]]
        %v590 = vstv %s589
        %v591 = vmul.f32 %v590, %v436
        %v592 = vmul.f32 %v590, %v439
        %v593 = vadd.f32 %v587, %v591
        %v594 = vadd.f32 %v588, %v592
        %s595 = sld [smem:[#allocation2 + $0xa]]
        %v596 = vstv %s595
        %v597 = vmul.f32 %v596, %v323
        %v598 = vmul.f32 %v596, %v324
        %v599 = vadd.f32 %v593, %v597
        %v600 = vadd.f32 %v594, %v598
        %s601 = sld [smem:[#allocation2 + $0xb]]
        %v602 = vstv %s601
        %v603 = vmul.f32 %v602, %v459
        %v604 = vmul.f32 %v602, %v462
        %v605 = vadd.f32 %v599, %v603
        %v606 = vadd.f32 %v600, %v604
        %s607 = sld [smem:[#allocation2 + $0x12]]
        %v608 = vstv %s607
        %v609 = vmul.f32 %v608, %v488
        %v610 = vmul.f32 %v608, %v491
        %v611 = vadd.f32 %v605, %v609
        %v612 = vadd.f32 %v606, %v610
        %s613 = sld [smem:[#allocation2 + $0x13]]
        %v614 = vstv %s613
        %v615 = vmul.f32 %v614, %v328
        %v616 = vmul.f32 %v614, %v329
        %v617 = vadd.f32 %v611, %v615
        %v618 = vadd.f32 %v612, %v616
        %s619 = sld [smem:[#allocation2 + $0x14]]
        %v620 = vstv %s619
        %v621 = vmul.f32 %v620, %v511
        %v622 = vmul.f32 %v620, %v514
        %v623 = vadd.f32 %v617, %v621
        %v624 = vadd.f32 %v618, %v622
        %s625 = sld [smem:[#allocation2 + $0x1b]]
        %v626 = vstv %s625
        %v627 = vmul.f32 %v626, %v540
        %v628 = vmul.f32 %v626, %v543
        %v629 = vadd.f32 %v623, %v627
        %v630 = vadd.f32 %v624, %v628
        %s631 = sld [smem:[#allocation2 + $0x1c]]
        %v632 = vstv %s631
        %v633 = vmul.f32 %v632, %v330
        %v634 = vmul.f32 %v632, %v331
        %v635 = vadd.f32 %v629, %v633
        %v636 = vadd.f32 %v630, %v634
        %s637 = sld [smem:[#allocation2 + $0x1d]]
        %v638 = vstv %s637
        %v639 = vmul.f32 %v638, %v563
        %v640 = vmul.f32 %v638, %v566
        %v641 = vadd.f32 %v635, %v639
        %v642 = vadd.f32 %v636, %v640
        %v644 = vsel %vm359, %v341, 0
        %v647 = vsel %vm359, %v342, 0
        %649 = vmatpush.msra.mxu0 0.0
        %650 = vmatpush.msra.mxu0 0.0
        %651 = vmatpush.msra.mxu0 0.0
        %652 = vmatpush.msra.mxu0 0.0
        %653 = vmatpush.msra.mxu0 0.0
        %654 = vmatpush.msra.mxu0 0.0
        %655 = vmatpush.msra.mxu0 0.0
        %656 = vmatpush.msra.mxu0 0.0
        %657 = vmatpush.msra.mxu0 0.0
        %658 = vmatpush.msra.mxu0 0.0
        %659 = vmatpush.msra.mxu0 0.0
        %660 = vmatpush.msra.mxu0 0.0
        %661 = vmatpush.msra.mxu0 0.0
        %662 = vmatpush.msra.mxu0 0.0
        %663 = vmatpush.msra.mxu0 %v642
        %664 = vmatpush.msra.mxu0 %v641
        %665 = vmatmul.f32.gmra.mxu0 %v644
        %v666 = vpop.f32.mrf.mxu0
        %v667 = vadd.f32 0.0, %v666
        %668 = vmatmul.f32.gmra.mxu0 %v647
        %v669 = vpop.f32.mrf.mxu0
        %v670 = vadd.f32 0.0, %v669
        %671 = vdwg.mxu0
        %v672 = vadd.f32 %v570, %v667
        %v673 = vadd.f32 %v570, %v670
        %s674 = sld [smem:[#allocation2 + $0x3]]
        %v675 = vstv %s674
        %v676 = vmul.f32 %v675, %v384
        %v677 = vmul.f32 %v675, %v387
        %v678 = vadd.f32 %v676, 0.0
        %v679 = vadd.f32 %v677, 0.0
        %s680 = sld [smem:[#allocation2 + $0x4]]
        %v681 = vstv %s680
        %v682 = vmul.f32 %v681, %v318
        %v683 = vmul.f32 %v681, %v319
        %v684 = vadd.f32 %v678, %v682
        %v685 = vadd.f32 %v679, %v683
        %s686 = sld [smem:[#allocation2 + $0x5]]
        %v687 = vstv %s686
        %v688 = vmul.f32 %v687, %v407
        %v689 = vmul.f32 %v687, %v410
        %v690 = vadd.f32 %v684, %v688
        %v691 = vadd.f32 %v685, %v689
        %s692 = sld [smem:[#allocation2 + $0xc]]
        %v693 = vstv %s692
        %v694 = vmul.f32 %v693, %v436
        %v695 = vmul.f32 %v693, %v439
        %v696 = vadd.f32 %v690, %v694
        %v697 = vadd.f32 %v691, %v695
        %s698 = sld [smem:[#allocation2 + $0xd]]
        %v699 = vstv %s698
        %v700 = vmul.f32 %v699, %v323
        %v701 = vmul.f32 %v699, %v324
        %v702 = vadd.f32 %v696, %v700
        %v703 = vadd.f32 %v697, %v701
        %s704 = sld [smem:[#allocation2 + $0xe]]
        %v705 = vstv %s704
        %v706 = vmul.f32 %v705, %v459
        %v707 = vmul.f32 %v705, %v462
        %v708 = vadd.f32 %v702, %v706
        %v709 = vadd.f32 %v703, %v707
        %s710 = sld [smem:[#allocation2 + $0x15]]
        %v711 = vstv %s710
        %v712 = vmul.f32 %v711, %v488
        %v713 = vmul.f32 %v711, %v491
        %v714 = vadd.f32 %v708, %v712
        %v715 = vadd.f32 %v709, %v713
        %s716 = sld [smem:[#allocation2 + $0x16]]
        %v717 = vstv %s716
        %v718 = vmul.f32 %v717, %v328
        %v719 = vmul.f32 %v717, %v329
        %v720 = vadd.f32 %v714, %v718
        %v721 = vadd.f32 %v715, %v719
        %s722 = sld [smem:[#allocation2 + $0x17]]
        %v723 = vstv %s722
        %v724 = vmul.f32 %v723, %v511
        %v725 = vmul.f32 %v723, %v514
        %v726 = vadd.f32 %v720, %v724
        %v727 = vadd.f32 %v721, %v725
        %s728 = sld [smem:[#allocation2 + $0x1e]]
        %v729 = vstv %s728
        %v730 = vmul.f32 %v729, %v540
        %v731 = vmul.f32 %v729, %v543
        %v732 = vadd.f32 %v726, %v730
        %v733 = vadd.f32 %v727, %v731
        %s734 = sld [smem:[#allocation2 + $0x1f]]
        %v735 = vstv %s734
        %v736 = vmul.f32 %v735, %v330
        %v737 = vmul.f32 %v735, %v331
        %v738 = vadd.f32 %v732, %v736
        %v739 = vadd.f32 %v733, %v737
        %s740 = sld [smem:[#allocation2 + $0x20]]
        %v741 = vstv %s740
        %v742 = vmul.f32 %v741, %v563
        %v743 = vmul.f32 %v741, %v566
        %v744 = vadd.f32 %v738, %v742
        %v745 = vadd.f32 %v739, %v743
        %v746 = vadd.f32 %v672, %v744
        %v747 = vadd.f32 %v673, %v745
        %s748 = sld [smem:[#allocation2 + $0x6]]
        %v749 = vstv %s748
        %v750 = vmul.f32 %v749, %v384
        %v751 = vmul.f32 %v749, %v387
        %v752 = vadd.f32 %v750, 0.0
        %v753 = vadd.f32 %v751, 0.0
        %s754 = sld [smem:[#allocation2 + $0x7]]
        %v755 = vstv %s754
        %v756 = vmul.f32 %v755, %v318
        %v757 = vmul.f32 %v755, %v319
        %v758 = vadd.f32 %v752, %v756
        %v759 = vadd.f32 %v753, %v757
        %s760 = sld [smem:[#allocation2 + $0x8]]
        %v761 = vstv %s760
        %v762 = vmul.f32 %v761, %v407
        %v763 = vmul.f32 %v761, %v410
        %v764 = vadd.f32 %v758, %v762
        %v765 = vadd.f32 %v759, %v763
        %s766 = sld [smem:[#allocation2 + $0xf]]
        %v767 = vstv %s766
        %v768 = vmul.f32 %v767, %v436
        %v769 = vmul.f32 %v767, %v439
        %v770 = vadd.f32 %v764, %v768
        %v771 = vadd.f32 %v765, %v769
        %s772 = sld [smem:[#allocation2 + $0x10]]
        %v773 = vstv %s772
        %v774 = vmul.f32 %v773, %v323
        %v775 = vmul.f32 %v773, %v324
        %v776 = vadd.f32 %v770, %v774
        %v777 = vadd.f32 %v771, %v775
        %s778 = sld [smem:[#allocation2 + $0x11]]
        %v779 = vstv %s778
        %v780 = vmul.f32 %v779, %v459
        %v781 = vmul.f32 %v779, %v462
        %v782 = vadd.f32 %v776, %v780
        %v783 = vadd.f32 %v777, %v781
        %s784 = sld [smem:[#allocation2 + $0x18]]
        %v785 = vstv %s784
        %v786 = vmul.f32 %v785, %v488
        %v787 = vmul.f32 %v785, %v491
        %v788 = vadd.f32 %v782, %v786
        %v789 = vadd.f32 %v783, %v787
        %s790 = sld [smem:[#allocation2 + $0x19]]
        %v791 = vstv %s790
        %v792 = vmul.f32 %v791, %v328
        %v793 = vmul.f32 %v791, %v329
        %v794 = vadd.f32 %v788, %v792
        %v795 = vadd.f32 %v789, %v793
        %s796 = sld [smem:[#allocation2 + $0x1a]]
        %v797 = vstv %s796
        %v798 = vmul.f32 %v797, %v511
        %v799 = vmul.f32 %v797, %v514
        %v800 = vadd.f32 %v794, %v798
        %v801 = vadd.f32 %v795, %v799
        %s802 = sld [smem:[#allocation2 + $0x21]]
        %v803 = vstv %s802
        %v804 = vmul.f32 %v803, %v540
        %v805 = vmul.f32 %v803, %v543
        %v806 = vadd.f32 %v800, %v804
        %v807 = vadd.f32 %v801, %v805
        %s808 = sld [smem:[#allocation2 + $0x22]]
        %v809 = vstv %s808
        %v810 = vmul.f32 %v809, %v330
        %v811 = vmul.f32 %v809, %v331
        %v812 = vadd.f32 %v806, %v810
        %v813 = vadd.f32 %v807, %v811
        %s814 = sld [smem:[#allocation2 + $0x23]]
        %v815 = vstv %s814
        %v816 = vmul.f32 %v815, %v563
        %v817 = vmul.f32 %v815, %v566
        %v818 = vadd.f32 %v812, %v816
        %v819 = vadd.f32 %v813, %v817
        %v821 = vsel %vm359, %v347, 0
        %v824 = vsel %vm359, %v348, 0
        %826 = vmatpush.msra.mxu0 0.0
        %827 = vmatpush.msra.mxu0 0.0
        %828 = vmatpush.msra.mxu0 0.0
        %829 = vmatpush.msra.mxu0 0.0
        %830 = vmatpush.msra.mxu0 0.0
        %831 = vmatpush.msra.mxu0 0.0
        %832 = vmatpush.msra.mxu0 0.0
        %833 = vmatpush.msra.mxu0 0.0
        %834 = vmatpush.msra.mxu0 0.0
        %835 = vmatpush.msra.mxu0 0.0
        %836 = vmatpush.msra.mxu0 0.0
        %837 = vmatpush.msra.mxu0 0.0
        %838 = vmatpush.msra.mxu0 0.0
        %839 = vmatpush.msra.mxu0 0.0
        %840 = vmatpush.msra.mxu0 %v819
        %841 = vmatpush.msra.mxu0 %v818
        %842 = vmatmul.f32.gmra.mxu0 %v821
        %v843 = vpop.f32.mrf.mxu0
        %v844 = vadd.f32 0.0, %v843
        %845 = vmatmul.f32.gmra.mxu0 %v824
        %v846 = vpop.f32.mrf.mxu0
        %v847 = vadd.f32 0.0, %v846
        %848 = vdwg.mxu0
        %v849 = vadd.f32 %v746, %v844
        %v850 = vadd.f32 %v747, %v847
        %v851 = vtanh.pop %v849
        %v852 = vtanh.pop %v850
        %v853 = vadd.f32 %v851, 1.0
        %v854 = vadd.f32 %v852, 1.0
        %v855 = vmul.f32 %v853, 0.5
        %v856 = vmul.f32 %v854, 0.5
        %857 = vst.msk [vmem:[%s301] sm:$0xff] %vm359, %v855
        %858 = vst.msk [vmem:[%s301 + $0x8] sm:$0xff] %vm359, %v856
        %s859 = sld [smem:[#allocation6 + $0x1]]
        %v860 = vstv %s859
        %v861 = vadd.f32 %v860, 0.0
        %s862 = sld [smem:[#allocation2 + $0x24]]
        %v863 = vstv %s862
        %v864 = vmul.f32 %v863, %v384
        %v865 = vmul.f32 %v863, %v387
        %v866 = vadd.f32 %v864, 0.0
        %v867 = vadd.f32 %v865, 0.0
        %s868 = sld [smem:[#allocation2 + $0x25]]
        %v869 = vstv %s868
        %v870 = vmul.f32 %v869, %v318
        %v871 = vmul.f32 %v869, %v319
        %v872 = vadd.f32 %v866, %v870
        %v873 = vadd.f32 %v867, %v871
        %s874 = sld [smem:[#allocation2 + $0x26]]
        %v875 = vstv %s874
        %v876 = vmul.f32 %v875, %v407
        %v877 = vmul.f32 %v875, %v410
        %v878 = vadd.f32 %v872, %v876
        %v879 = vadd.f32 %v873, %v877
        %s880 = sld [smem:[#allocation2 + $0x2d]]
        %v881 = vstv %s880
        %v882 = vmul.f32 %v881, %v436
        %v883 = vmul.f32 %v881, %v439
        %v884 = vadd.f32 %v878, %v882
        %v885 = vadd.f32 %v879, %v883
        %s886 = sld [smem:[#allocation2 + $0x2e]]
        %v887 = vstv %s886
        %v888 = vmul.f32 %v887, %v323
        %v889 = vmul.f32 %v887, %v324
        %v890 = vadd.f32 %v884, %v888
        %v891 = vadd.f32 %v885, %v889
        %s892 = sld [smem:[#allocation2 + $0x2f]]
        %v893 = vstv %s892
        %v894 = vmul.f32 %v893, %v459
        %v895 = vmul.f32 %v893, %v462
        %v896 = vadd.f32 %v890, %v894
        %v897 = vadd.f32 %v891, %v895
        %s898 = sld [smem:[#allocation2 + $0x36]]
        %v899 = vstv %s898
        %v900 = vmul.f32 %v899, %v488
        %v901 = vmul.f32 %v899, %v491
        %v902 = vadd.f32 %v896, %v900
        %v903 = vadd.f32 %v897, %v901
        %s904 = sld [smem:[#allocation2 + $0x37]]
        %v905 = vstv %s904
        %v906 = vmul.f32 %v905, %v328
        %v907 = vmul.f32 %v905, %v329
        %v908 = vadd.f32 %v902, %v906
        %v909 = vadd.f32 %v903, %v907
        %s910 = sld [smem:[#allocation2 + $0x38]]
        %v911 = vstv %s910
        %v912 = vmul.f32 %v911, %v511
        %v913 = vmul.f32 %v911, %v514
        %v914 = vadd.f32 %v908, %v912
        %v915 = vadd.f32 %v909, %v913
        %s916 = sld [smem:[#allocation2 + $0x3f]]
        %v917 = vstv %s916
        %v918 = vmul.f32 %v917, %v540
        %v919 = vmul.f32 %v917, %v543
        %v920 = vadd.f32 %v914, %v918
        %v921 = vadd.f32 %v915, %v919
        %s922 = sld [smem:[#allocation2 + $0x40]]
        %v923 = vstv %s922
        %v924 = vmul.f32 %v923, %v330
        %v925 = vmul.f32 %v923, %v331
        %v926 = vadd.f32 %v920, %v924
        %v927 = vadd.f32 %v921, %v925
        %s928 = sld [smem:[#allocation2 + $0x41]]
        %v929 = vstv %s928
        %v930 = vmul.f32 %v929, %v563
        %v931 = vmul.f32 %v929, %v566
        %v932 = vadd.f32 %v926, %v930
        %v933 = vadd.f32 %v927, %v931
        %934 = vmatpush.msra.mxu0 0.0
        %935 = vmatpush.msra.mxu0 0.0
        %936 = vmatpush.msra.mxu0 0.0
        %937 = vmatpush.msra.mxu0 0.0
        %938 = vmatpush.msra.mxu0 0.0
        %939 = vmatpush.msra.mxu0 0.0
        %940 = vmatpush.msra.mxu0 0.0
        %941 = vmatpush.msra.mxu0 0.0
        %942 = vmatpush.msra.mxu0 0.0
        %943 = vmatpush.msra.mxu0 0.0
        %944 = vmatpush.msra.mxu0 0.0
        %945 = vmatpush.msra.mxu0 0.0
        %946 = vmatpush.msra.mxu0 0.0
        %947 = vmatpush.msra.mxu0 0.0
        %948 = vmatpush.msra.mxu0 %v933
        %949 = vmatpush.msra.mxu0 %v932
        %950 = vmatmul.f32.gmra.mxu0 %v644
        %v951 = vpop.f32.mrf.mxu0
        %v952 = vadd.f32 0.0, %v951
        %953 = vmatmul.f32.gmra.mxu0 %v647
        %v954 = vpop.f32.mrf.mxu0
        %v955 = vadd.f32 0.0, %v954
        %956 = vdwg.mxu0
        %v957 = vadd.f32 %v861, %v952
        %v958 = vadd.f32 %v861, %v955
        %s959 = sld [smem:[#allocation2 + $0x27]]
        %v960 = vstv %s959
        %v961 = vmul.f32 %v960, %v384
        %v962 = vmul.f32 %v960, %v387
        %v963 = vadd.f32 %v961, 0.0
        %v964 = vadd.f32 %v962, 0.0
        %s965 = sld [smem:[#allocation2 + $0x28]]
        %v966 = vstv %s965
        %v967 = vmul.f32 %v966, %v318
        %v968 = vmul.f32 %v966, %v319
        %v969 = vadd.f32 %v963, %v967
        %v970 = vadd.f32 %v964, %v968
        %s971 = sld [smem:[#allocation2 + $0x29]]
        %v972 = vstv %s971
        %v973 = vmul.f32 %v972, %v407
        %v974 = vmul.f32 %v972, %v410
        %v975 = vadd.f32 %v969, %v973
        %v976 = vadd.f32 %v970, %v974
        %s977 = sld [smem:[#allocation2 + $0x30]]
        %v978 = vstv %s977
        %v979 = vmul.f32 %v978, %v436
        %v980 = vmul.f32 %v978, %v439
        %v981 = vadd.f32 %v975, %v979
        %v982 = vadd.f32 %v976, %v980
        %s983 = sld [smem:[#allocation2 + $0x31]]
        %v984 = vstv %s983
        %v985 = vmul.f32 %v984, %v323
        %v986 = vmul.f32 %v984, %v324
        %v987 = vadd.f32 %v981, %v985
        %v988 = vadd.f32 %v982, %v986
        %s989 = sld [smem:[#allocation2 + $0x32]]
        %v990 = vstv %s989
        %v991 = vmul.f32 %v990, %v459
        %v992 = vmul.f32 %v990, %v462
        %v993 = vadd.f32 %v987, %v991
        %v994 = vadd.f32 %v988, %v992
        %s995 = sld [smem:[#allocation2 + $0x39]]
        %v996 = vstv %s995
        %v997 = vmul.f32 %v996, %v488
        %v998 = vmul.f32 %v996, %v491
        %v999 = vadd.f32 %v993, %v997
        %v1000 = vadd.f32 %v994, %v998
        %s1001 = sld [smem:[#allocation2 + $0x3a]]
        %v1002 = vstv %s1001
        %v1003 = vmul.f32 %v1002, %v328
        %v1004 = vmul.f32 %v1002, %v329
        %v1005 = vadd.f32 %v999, %v1003
        %v1006 = vadd.f32 %v1000, %v1004
        %s1007 = sld [smem:[#allocation2 + $0x3b]]
        %v1008 = vstv %s1007
        %v1009 = vmul.f32 %v1008, %v511
        %v1010 = vmul.f32 %v1008, %v514
        %v1011 = vadd.f32 %v1005, %v1009
        %v1012 = vadd.f32 %v1006, %v1010
        %s1013 = sld [smem:[#allocation2 + $0x42]]
        %v1014 = vstv %s1013
        %v1015 = vmul.f32 %v1014, %v540
        %v1016 = vmul.f32 %v1014, %v543
        %v1017 = vadd.f32 %v1011, %v1015
        %v1018 = vadd.f32 %v1012, %v1016
        %s1019 = sld [smem:[#allocation2 + $0x43]]
        %v1020 = vstv %s1019
        %v1021 = vmul.f32 %v1020, %v330
        %v1022 = vmul.f32 %v1020, %v331
        %v1023 = vadd.f32 %v1017, %v1021
        %v1024 = vadd.f32 %v1018, %v1022
        %s1025 = sld [smem:[#allocation2 + $0x44]]
        %v1026 = vstv %s1025
        %v1027 = vmul.f32 %v1026, %v563
        %v1028 = vmul.f32 %v1026, %v566
        %v1029 = vadd.f32 %v1023, %v1027
        %v1030 = vadd.f32 %v1024, %v1028
        %v1031 = vadd.f32 %v957, %v1029
        %v1032 = vadd.f32 %v958, %v1030
        %s1033 = sld [smem:[#allocation2 + $0x2a]]
        %v1034 = vstv %s1033
        %v1035 = vmul.f32 %v1034, %v384
        %v1036 = vmul.f32 %v1034, %v387
        %v1037 = vadd.f32 %v1035, 0.0
        %v1038 = vadd.f32 %v1036, 0.0
        %s1039 = sld [smem:[#allocation2 + $0x2b]]
        %v1040 = vstv %s1039
        %v1041 = vmul.f32 %v1040, %v318
        %v1042 = vmul.f32 %v1040, %v319
        %v1043 = vadd.f32 %v1037, %v1041
        %v1044 = vadd.f32 %v1038, %v1042
        %s1045 = sld [smem:[#allocation2 + $0x2c]]
        %v1046 = vstv %s1045
        %v1047 = vmul.f32 %v1046, %v407
        %v1048 = vmul.f32 %v1046, %v410
        %v1049 = vadd.f32 %v1043, %v1047
        %v1050 = vadd.f32 %v1044, %v1048
        %s1051 = sld [smem:[#allocation2 + $0x33]]
        %v1052 = vstv %s1051
        %v1053 = vmul.f32 %v1052, %v436
        %v1054 = vmul.f32 %v1052, %v439
        %v1055 = vadd.f32 %v1049, %v1053
        %v1056 = vadd.f32 %v1050, %v1054
        %s1057 = sld [smem:[#allocation2 + $0x34]]
        %v1058 = vstv %s1057
        %v1059 = vmul.f32 %v1058, %v323
        %v1060 = vmul.f32 %v1058, %v324
        %v1061 = vadd.f32 %v1055, %v1059
        %v1062 = vadd.f32 %v1056, %v1060
        %s1063 = sld [smem:[#allocation2 + $0x35]]
        %v1064 = vstv %s1063
        %v1065 = vmul.f32 %v1064, %v459
        %v1066 = vmul.f32 %v1064, %v462
        %v1067 = vadd.f32 %v1061, %v1065
        %v1068 = vadd.f32 %v1062, %v1066
        %s1069 = sld [smem:[#allocation2 + $0x3c]]
        %v1070 = vstv %s1069
        %v1071 = vmul.f32 %v1070, %v488
        %v1072 = vmul.f32 %v1070, %v491
        %v1073 = vadd.f32 %v1067, %v1071
        %v1074 = vadd.f32 %v1068, %v1072
        %s1075 = sld [smem:[#allocation2 + $0x3d]]
        %v1076 = vstv %s1075
        %v1077 = vmul.f32 %v1076, %v328
        %v1078 = vmul.f32 %v1076, %v329
        %v1079 = vadd.f32 %v1073, %v1077
        %v1080 = vadd.f32 %v1074, %v1078
        %s1081 = sld [smem:[#allocation2 + $0x3e]]
        %v1082 = vstv %s1081
        %v1083 = vmul.f32 %v1082, %v511
        %v1084 = vmul.f32 %v1082, %v514
        %v1085 = vadd.f32 %v1079, %v1083
        %v1086 = vadd.f32 %v1080, %v1084
        %s1087 = sld [smem:[#allocation2 + $0x45]]
        %v1088 = vstv %s1087
        %v1089 = vmul.f32 %v1088, %v540
        %v1090 = vmul.f32 %v1088, %v543
        %v1091 = vadd.f32 %v1085, %v1089
        %v1092 = vadd.f32 %v1086, %v1090
        %s1093 = sld [smem:[#allocation2 + $0x46]]
        %v1094 = vstv %s1093
        %v1095 = vmul.f32 %v1094, %v330
        %v1096 = vmul.f32 %v1094, %v331
        %v1097 = vadd.f32 %v1091, %v1095
        %v1098 = vadd.f32 %v1092, %v1096
        %s1099 = sld [smem:[#allocation2 + $0x47]]
        %v1100 = vstv %s1099
        %v1101 = vmul.f32 %v1100, %v563
        %v1102 = vmul.f32 %v1100, %v566
        %v1103 = vadd.f32 %v1097, %v1101
        %v1104 = vadd.f32 %v1098, %v1102
        %1105 = vmatpush.msra.mxu0 0.0
        %1106 = vmatpush.msra.mxu0 0.0
        %1107 = vmatpush.msra.mxu0 0.0
        %1108 = vmatpush.msra.mxu0 0.0
        %1109 = vmatpush.msra.mxu0 0.0
        %1110 = vmatpush.msra.mxu0 0.0
        %1111 = vmatpush.msra.mxu0 0.0
        %1112 = vmatpush.msra.mxu0 0.0
        %1113 = vmatpush.msra.mxu0 0.0
        %1114 = vmatpush.msra.mxu0 0.0
        %1115 = vmatpush.msra.mxu0 0.0
        %1116 = vmatpush.msra.mxu0 0.0
        %1117 = vmatpush.msra.mxu0 0.0
        %1118 = vmatpush.msra.mxu0 0.0
        %1119 = vmatpush.msra.mxu0 %v1104
        %1120 = vmatpush.msra.mxu0 %v1103
        %1121 = vmatmul.f32.gmra.mxu0 %v821
        %v1122 = vpop.f32.mrf.mxu0
        %v1123 = vadd.f32 0.0, %v1122
        %1124 = vmatmul.f32.gmra.mxu0 %v824
        %v1125 = vpop.f32.mrf.mxu0
        %v1126 = vadd.f32 0.0, %v1125
        %1127 = vdwg.mxu0
        %v1128 = vadd.f32 %v1031, %v1123
        %v1129 = vadd.f32 %v1032, %v1126
        %v1130 = vtanh.pop %v1128
        %v1131 = vtanh.pop %v1129
        %v1132 = vadd.f32 %v1130, 1.0
        %v1133 = vadd.f32 %v1131, 1.0
        %v1134 = vmul.f32 %v1132, 0.5
        %v1135 = vmul.f32 %v1133, 0.5
        %s1136 = scalar_lea.vmem %s301, 16 [#allocation9]
        %1137 = vst.msk [vmem:[%s1136] sm:$0xff] %vm359, %v1134
        %1138 = vst.msk [vmem:[%s1136 + $0x8] sm:$0xff] %vm359, %v1135
        %s1139 = sld [smem:[#allocation6 + $0x2]]
        %v1140 = vstv %s1139
        %v1141 = vadd.f32 %v1140, 0.0
        %s1142 = sld [smem:[#allocation2 + $0x48]]
        %v1143 = vstv %s1142
        %v1144 = vmul.f32 %v1143, %v384
        %v1145 = vmul.f32 %v1143, %v387
        %v1146 = vadd.f32 %v1144, 0.0
        %v1147 = vadd.f32 %v1145, 0.0
        %s1148 = sld [smem:[#allocation2 + $0x49]]
        %v1149 = vstv %s1148
        %v1150 = vmul.f32 %v1149, %v318
        %v1151 = vmul.f32 %v1149, %v319
        %v1152 = vadd.f32 %v1146, %v1150
        %v1153 = vadd.f32 %v1147, %v1151
        %s1154 = sld [smem:[#allocation2 + $0x4a]]
        %v1155 = vstv %s1154
        %v1156 = vmul.f32 %v1155, %v407
        %v1157 = vmul.f32 %v1155, %v410
        %v1158 = vadd.f32 %v1152, %v1156
        %v1159 = vadd.f32 %v1153, %v1157
        %s1160 = sld [smem:[#allocation2 + $0x51]]
        %v1161 = vstv %s1160
        %v1162 = vmul.f32 %v1161, %v436
        %v1163 = vmul.f32 %v1161, %v439
        %v1164 = vadd.f32 %v1158, %v1162
        %v1165 = vadd.f32 %v1159, %v1163
        %s1166 = sld [smem:[#allocation2 + $0x52]]
        %v1167 = vstv %s1166
        %v1168 = vmul.f32 %v1167, %v323
        %v1169 = vmul.f32 %v1167, %v324
        %v1170 = vadd.f32 %v1164, %v1168
        %v1171 = vadd.f32 %v1165, %v1169
        %s1172 = sld [smem:[#allocation2 + $0x53]]
        %v1173 = vstv %s1172
        %v1174 = vmul.f32 %v1173, %v459
        %v1175 = vmul.f32 %v1173, %v462
        %v1176 = vadd.f32 %v1170, %v1174
        %v1177 = vadd.f32 %v1171, %v1175
        %s1178 = sld [smem:[#allocation2 + $0x5a]]
        %v1179 = vstv %s1178
        %v1180 = vmul.f32 %v1179, %v488
        %v1181 = vmul.f32 %v1179, %v491
        %v1182 = vadd.f32 %v1176, %v1180
        %v1183 = vadd.f32 %v1177, %v1181
        %s1184 = sld [smem:[#allocation2 + $0x5b]]
        %v1185 = vstv %s1184
        %v1186 = vmul.f32 %v1185, %v328
        %v1187 = vmul.f32 %v1185, %v329
        %v1188 = vadd.f32 %v1182, %v1186
        %v1189 = vadd.f32 %v1183, %v1187
        %s1190 = sld [smem:[#allocation2 + $0x5c]]
        %v1191 = vstv %s1190
        %v1192 = vmul.f32 %v1191, %v511
        %v1193 = vmul.f32 %v1191, %v514
        %v1194 = vadd.f32 %v1188, %v1192
        %v1195 = vadd.f32 %v1189, %v1193
        %s1196 = sld [smem:[#allocation2 + $0x63]]
        %v1197 = vstv %s1196
        %v1198 = vmul.f32 %v1197, %v540
        %v1199 = vmul.f32 %v1197, %v543
        %v1200 = vadd.f32 %v1194, %v1198
        %v1201 = vadd.f32 %v1195, %v1199
        %s1202 = sld [smem:[#allocation2 + $0x64]]
        %v1203 = vstv %s1202
        %v1204 = vmul.f32 %v1203, %v330
        %v1205 = vmul.f32 %v1203, %v331
        %v1206 = vadd.f32 %v1200, %v1204
        %v1207 = vadd.f32 %v1201, %v1205
        %s1208 = sld [smem:[#allocation2 + $0x65]]
        %v1209 = vstv %s1208
        %v1210 = vmul.f32 %v1209, %v563
        %v1211 = vmul.f32 %v1209, %v566
        %v1212 = vadd.f32 %v1206, %v1210
        %v1213 = vadd.f32 %v1207, %v1211
        %1214 = vmatpush.msra.mxu0 0.0
        %1215 = vmatpush.msra.mxu0 0.0
        %1216 = vmatpush.msra.mxu0 0.0
        %1217 = vmatpush.msra.mxu0 0.0
        %1218 = vmatpush.msra.mxu0 0.0
        %1219 = vmatpush.msra.mxu0 0.0
        %1220 = vmatpush.msra.mxu0 0.0
        %1221 = vmatpush.msra.mxu0 0.0
        %1222 = vmatpush.msra.mxu0 0.0
        %1223 = vmatpush.msra.mxu0 0.0
        %1224 = vmatpush.msra.mxu0 0.0
        %1225 = vmatpush.msra.mxu0 0.0
        %1226 = vmatpush.msra.mxu0 0.0
        %1227 = vmatpush.msra.mxu0 0.0
        %1228 = vmatpush.msra.mxu0 %v1213
        %1229 = vmatpush.msra.mxu0 %v1212
        %1230 = vmatmul.f32.gmra.mxu0 %v644
        %v1231 = vpop.f32.mrf.mxu0
        %v1232 = vadd.f32 0.0, %v1231
        %1233 = vmatmul.f32.gmra.mxu0 %v647
        %v1234 = vpop.f32.mrf.mxu0
        %v1235 = vadd.f32 0.0, %v1234
        %1236 = vdwg.mxu0
        %v1237 = vadd.f32 %v1141, %v1232
        %v1238 = vadd.f32 %v1141, %v1235
        %s1239 = sld [smem:[#allocation2 + $0x4b]]
        %v1240 = vstv %s1239
        %v1241 = vmul.f32 %v1240, %v384
        %v1242 = vmul.f32 %v1240, %v387
        %v1243 = vadd.f32 %v1241, 0.0
        %v1244 = vadd.f32 %v1242, 0.0
        %s1245 = sld [smem:[#allocation2 + $0x4c]]
        %v1246 = vstv %s1245
        %v1247 = vmul.f32 %v1246, %v318
        %v1248 = vmul.f32 %v1246, %v319
        %v1249 = vadd.f32 %v1243, %v1247
        %v1250 = vadd.f32 %v1244, %v1248
        %s1251 = sld [smem:[#allocation2 + $0x4d]]
        %v1252 = vstv %s1251
        %v1253 = vmul.f32 %v1252, %v407
        %v1254 = vmul.f32 %v1252, %v410
        %v1255 = vadd.f32 %v1249, %v1253
        %v1256 = vadd.f32 %v1250, %v1254
        %s1257 = sld [smem:[#allocation2 + $0x54]]
        %v1258 = vstv %s1257
        %v1259 = vmul.f32 %v1258, %v436
        %v1260 = vmul.f32 %v1258, %v439
        %v1261 = vadd.f32 %v1255, %v1259
        %v1262 = vadd.f32 %v1256, %v1260
        %s1263 = sld [smem:[#allocation2 + $0x55]]
        %v1264 = vstv %s1263
        %v1265 = vmul.f32 %v1264, %v323
        %v1266 = vmul.f32 %v1264, %v324
        %v1267 = vadd.f32 %v1261, %v1265
        %v1268 = vadd.f32 %v1262, %v1266
        %s1269 = sld [smem:[#allocation2 + $0x56]]
        %v1270 = vstv %s1269
        %v1271 = vmul.f32 %v1270, %v459
        %v1272 = vmul.f32 %v1270, %v462
        %v1273 = vadd.f32 %v1267, %v1271
        %v1274 = vadd.f32 %v1268, %v1272
        %s1275 = sld [smem:[#allocation2 + $0x5d]]
        %v1276 = vstv %s1275
        %v1277 = vmul.f32 %v1276, %v488
        %v1278 = vmul.f32 %v1276, %v491
        %v1279 = vadd.f32 %v1273, %v1277
        %v1280 = vadd.f32 %v1274, %v1278
        %s1281 = sld [smem:[#allocation2 + $0x5e]]
        %v1282 = vstv %s1281
        %v1283 = vmul.f32 %v1282, %v328
        %v1284 = vmul.f32 %v1282, %v329
        %v1285 = vadd.f32 %v1279, %v1283
        %v1286 = vadd.f32 %v1280, %v1284
        %s1287 = sld [smem:[#allocation2 + $0x5f]]
        %v1288 = vstv %s1287
        %v1289 = vmul.f32 %v1288, %v511
        %v1290 = vmul.f32 %v1288, %v514
        %v1291 = vadd.f32 %v1285, %v1289
        %v1292 = vadd.f32 %v1286, %v1290
        %s1293 = sld [smem:[#allocation2 + $0x66]]
        %v1294 = vstv %s1293
        %v1295 = vmul.f32 %v1294, %v540
        %v1296 = vmul.f32 %v1294, %v543
        %v1297 = vadd.f32 %v1291, %v1295
        %v1298 = vadd.f32 %v1292, %v1296
        %s1299 = sld [smem:[#allocation2 + $0x67]]
        %v1300 = vstv %s1299
        %v1301 = vmul.f32 %v1300, %v330
        %v1302 = vmul.f32 %v1300, %v331
        %v1303 = vadd.f32 %v1297, %v1301
        %v1304 = vadd.f32 %v1298, %v1302
        %s1305 = sld [smem:[#allocation2 + $0x68]]
        %v1306 = vstv %s1305
        %v1307 = vmul.f32 %v1306, %v563
        %v1308 = vmul.f32 %v1306, %v566
        %v1309 = vadd.f32 %v1303, %v1307
        %v1310 = vadd.f32 %v1304, %v1308
        %v1311 = vadd.f32 %v1237, %v1309
        %v1312 = vadd.f32 %v1238, %v1310
        %s1313 = sld [smem:[#allocation2 + $0x4e]]
        %v1314 = vstv %s1313
        %v1315 = vmul.f32 %v1314, %v384
        %v1316 = vmul.f32 %v1314, %v387
        %v1317 = vadd.f32 %v1315, 0.0
        %v1318 = vadd.f32 %v1316, 0.0
        %s1319 = sld [smem:[#allocation2 + $0x4f]]
        %v1320 = vstv %s1319
        %v1321 = vmul.f32 %v1320, %v318
        %v1322 = vmul.f32 %v1320, %v319
        %v1323 = vadd.f32 %v1317, %v1321
        %v1324 = vadd.f32 %v1318, %v1322
        %s1325 = sld [smem:[#allocation2 + $0x50]]
        %v1326 = vstv %s1325
        %v1327 = vmul.f32 %v1326, %v407
        %v1328 = vmul.f32 %v1326, %v410
        %v1329 = vadd.f32 %v1323, %v1327
        %v1330 = vadd.f32 %v1324, %v1328
        %s1331 = sld [smem:[#allocation2 + $0x57]]
        %v1332 = vstv %s1331
        %v1333 = vmul.f32 %v1332, %v436
        %v1334 = vmul.f32 %v1332, %v439
        %v1335 = vadd.f32 %v1329, %v1333
        %v1336 = vadd.f32 %v1330, %v1334
        %s1337 = sld [smem:[#allocation2 + $0x58]]
        %v1338 = vstv %s1337
        %v1339 = vmul.f32 %v1338, %v323
        %v1340 = vmul.f32 %v1338, %v324
        %v1341 = vadd.f32 %v1335, %v1339
        %v1342 = vadd.f32 %v1336, %v1340
        %s1343 = sld [smem:[#allocation2 + $0x59]]
        %v1344 = vstv %s1343
        %v1345 = vmul.f32 %v1344, %v459
        %v1346 = vmul.f32 %v1344, %v462
        %v1347 = vadd.f32 %v1341, %v1345
        %v1348 = vadd.f32 %v1342, %v1346
        %s1349 = sld [smem:[#allocation2 + $0x60]]
        %v1350 = vstv %s1349
        %v1351 = vmul.f32 %v1350, %v488
        %v1352 = vmul.f32 %v1350, %v491
        %v1353 = vadd.f32 %v1347, %v1351
        %v1354 = vadd.f32 %v1348, %v1352
        %s1355 = sld [smem:[#allocation2 + $0x61]]
        %v1356 = vstv %s1355
        %v1357 = vmul.f32 %v1356, %v328
        %v1358 = vmul.f32 %v1356, %v329
        %v1359 = vadd.f32 %v1353, %v1357
        %v1360 = vadd.f32 %v1354, %v1358
        %s1361 = sld [smem:[#allocation2 + $0x62]]
        %v1362 = vstv %s1361
        %v1363 = vmul.f32 %v1362, %v511
        %v1364 = vmul.f32 %v1362, %v514
        %v1365 = vadd.f32 %v1359, %v1363
        %v1366 = vadd.f32 %v1360, %v1364
        %s1367 = sld [smem:[#allocation2 + $0x69]]
        %v1368 = vstv %s1367
        %v1369 = vmul.f32 %v1368, %v540
        %v1370 = vmul.f32 %v1368, %v543
        %v1371 = vadd.f32 %v1365, %v1369
        %v1372 = vadd.f32 %v1366, %v1370
        %s1373 = sld [smem:[#allocation2 + $0x6a]]
        %v1374 = vstv %s1373
        %v1375 = vmul.f32 %v1374, %v330
        %v1376 = vmul.f32 %v1374, %v331
        %v1377 = vadd.f32 %v1371, %v1375
        %v1378 = vadd.f32 %v1372, %v1376
        %s1379 = sld [smem:[#allocation2 + $0x6b]]
        %v1380 = vstv %s1379
        %v1381 = vmul.f32 %v1380, %v563
        %v1382 = vmul.f32 %v1380, %v566
        %v1383 = vadd.f32 %v1377, %v1381
        %v1384 = vadd.f32 %v1378, %v1382
        %1385 = vmatpush.msra.mxu0 0.0
        %1386 = vmatpush.msra.mxu0 0.0
        %1387 = vmatpush.msra.mxu0 0.0
        %1388 = vmatpush.msra.mxu0 0.0
        %1389 = vmatpush.msra.mxu0 0.0
        %1390 = vmatpush.msra.mxu0 0.0
        %1391 = vmatpush.msra.mxu0 0.0
        %1392 = vmatpush.msra.mxu0 0.0
        %1393 = vmatpush.msra.mxu0 0.0
        %1394 = vmatpush.msra.mxu0 0.0
        %1395 = vmatpush.msra.mxu0 0.0
        %1396 = vmatpush.msra.mxu0 0.0
        %1397 = vmatpush.msra.mxu0 0.0
        %1398 = vmatpush.msra.mxu0 0.0
        %1399 = vmatpush.msra.mxu0 %v1384
        %1400 = vmatpush.msra.mxu0 %v1383
        %1401 = vmatmul.f32.gmra.mxu0 %v821
        %v1402 = vpop.f32.mrf.mxu0
        %v1403 = vadd.f32 0.0, %v1402
        %1404 = vmatmul.f32.gmra.mxu0 %v824
        %v1405 = vpop.f32.mrf.mxu0
        %v1406 = vadd.f32 0.0, %v1405
        %1407 = vdwg.mxu0
        %v1408 = vadd.f32 %v1311, %v1403
        %v1409 = vadd.f32 %v1312, %v1406
        %v1410 = vtanh.pop %v1408
        %v1411 = vtanh.pop %v1409
        %v1412 = vadd.f32 %v1410, 1.0
        %v1413 = vadd.f32 %v1411, 1.0
        %v1414 = vmul.f32 %v1412, 0.5
        %v1415 = vmul.f32 %v1413, 0.5
        %s1416 = scalar_lea.vmem %s301, 32 [#allocation9]
        %1417 = vst.msk [vmem:[%s1416] sm:$0xff] %vm359, %v1414
        %1418 = vst.msk [vmem:[%s1416 + $0x8] sm:$0xff] %vm359, %v1415
        %s1419 = sand.u32 %s152, 1
        %s1420 = scalar_lea.sflag [#allocation4], %s1419
        %s1421 = sand.u32 %s152, 1
        %s1422 = smul.addr %s1421, 48
        %s1423 = scalar_lea.vmem [#allocation9], %s1422
        // Predicated region
        $region53: #{inpainting_model_forward.1} parent=39 // pred_check
          %p1424 = pneg %p162
        $region54: #{inpainting_model_forward.1} parent=39 // pred_check_branch
          %1426 = sbr.rel (%p1424) target = $region56
        $region55: #{inpainting_model_forward.1} parent=39 // pred_region
          %1428 = vsyncadd %s1420, 0
          %s1429 = smul.addr %s24, 6
          %s1430 = smul.addr %s1429, 8
          %s1431 = scalar_lea.hbm %s5, %s1430
          %s1432 = sshll.u32 %s1423, 4
          %s1433 = int_to_ptr.vmem [resolvable:$true] %s1432
          %s1434 = sshll.u32 %s1431, 4
          %s1435 = int_to_ptr.hbm [resolvable:$true] %s1434
          %1440 = dma.vmem_to_hbm [thread:$0]  %s1433, 768, %s1435, %s1420, 128, 128, 8
        $region56: #{inpainting_model_forward.1} parent=39 // pred_fallthru
          _
      $region40: #{inpainting_model_forward.1} parent=5 // pred_fallthru
        _
      %p1441 = scmp.le.s32.totalorder 2, %s19
      // Predicated region
      $region57: #{inpainting_model_forward.1} parent=5 // pred_check
        %p1442 = pneg %p1441
      $region58: #{inpainting_model_forward.1} parent=5 // pred_check_branch
        %1444 = sbr.rel (%p1442) target = $region60
      $region59: #{inpainting_model_forward.1} parent=5 // pred_region
        %s1445 = ssub.s32 %s19, 2
        // Predicated region
        $region61: #{inpainting_model_forward.1} parent=59 // pred_check
          %p1446 = pneg %p168
        $region62: #{inpainting_model_forward.1} parent=59 // pred_check_branch
          %1448 = sbr.rel (%p1446) target = $region64
        $region63: #{inpainting_model_forward.1} parent=59 // pred_region
          %s1449 = sand.u32 %s153, 1
          %s1450 = scalar_lea.sflag [#allocation4], %s1449
          %s1451 = sand.u32 %s153, 1
          %s1452 = smul.addr %s1451, 48
          %s1453 = scalar_lea.vmem [#allocation9], %s1452
          %1455 = dma.done %s1450, 768
        $region64: #{inpainting_model_forward.1} parent=59 // pred_fallthru
          _
      $region60: #{inpainting_model_forward.1} parent=5 // pred_fallthru
        _
    $region6: #{inpainting_model_forward.1} parent=1 // loop_footer
      %s23 = sadd.s32 1, %s19
    $region7: #{inpainting_model_forward.1} parent=1 // loop_footer_branch
      %18 = sbr.rel target = $region3
    $region8: #{inpainting_model_forward.1} parent=1 // loop_exit
      _
    %1456 = vsyncpa [#allocation3], 1
    %s1457 = scalar_lea.sflag [#allocation3], 1
    %1458 = vsyncpa %s1457, 1
    %1459 = vsyncpa [#allocation4], 1
    %s1460 = scalar_lea.sflag [#allocation4], 1
    %1461 = vsyncpa %s1460, 1
    %1462 = vsyncpa [#allocation5], 1
    %s1463 = scalar_lea.sflag [#allocation5], 1
    %1464 = vsyncpa %s1463, 1
    %1465 = vsyncpa [#allocation7], 1

</llo_original>
